<compile_context>
chip_gen: v7x
topology: tpu7x:2x2x1
jax: 0.10.0
libtpu: 0.0.40
codegen_flags: <defaults>
</compile_context>

<pallas_src>
import functools

import jax
import jax.numpy as jnp
from jax.experimental import pallas as pl
from jax.experimental.pallas import tpu as pltpu


def _make_conv3x3_bias_elu_kernel(chans, tile_rows, out_w):
    """Kernel factory for a fixed (per-source channels, TH, W) configuration."""
    n_src = len(chans)
    TH, W = tile_rows, out_w

    def kernel(*refs):
        src_refs = refs[:n_src]
        w_ref, b_ref, o_ref, patches_ref = refs[n_src:n_src + 4]

        # im2col into the patches scratch; columns are source-major, then
        # dy-major, then dx, then channel (the wrapper permutes the weight
        # columns to match).  One 3*C-lane-wide chunk store per (source, dy)
        # instead of nine narrow C-lane stores.
        col = 0
        for s in range(n_src):
            C = chans[s]
            xp = src_refs[s][0]                        # (TH+2, Wp, C)
            for dy in range(3):
                rows = xp[dy:dy + TH]                  # (TH, Wp, C)
                chunk = jnp.concatenate(
                    [rows[:, dx:dx + W, :] for dx in range(3)], axis=2)
                patches_ref[:, col:col + 3 * C] = chunk.reshape(TH * W, 3 * C)
                col += 3 * C

        # Single fused MXU matmul, contraction expressed on the existing K
        # axis of both operands (no explicit patches.T relayout).  Result is
        # (Cout, TH*W): the large TH*W axis maps onto the 128-lane dim, so
        # the output stores are dense; the wrapper recovers NCHW by reshape.
        acc = jax.lax.dot_general(
            w_ref[...], patches_ref[...],
            dimension_numbers=(((1,), (1,)), ((), ())),
            preferred_element_type=jnp.float32)
        acc = acc + b_ref[...]                         # (Cout, TH*W) + (Cout, 1)

        # ELU(alpha=1): single clamped transcendental on the negative branch.
        neg = jnp.exp(jnp.minimum(acc, 0.0)) - 1.0
        out = jnp.where(acc > 0.0, acc, neg)

        o_ref[...] = out[None].astype(o_ref.dtype)     # (1, Cout, TH*W)

    return kernel


def _vmem_need_bytes(tile_rows, W, Wp, chans, c_out, itemsize):
    k = 9 * sum(chans)
    inputs = 2 * sum((tile_rows + 2) * Wp * c for c in chans) * itemsize
    scratch = tile_rows * W * k * itemsize
    outputs = 2 * c_out * tile_rows * W * itemsize
    weights = 2 * (c_out * k + c_out) * 4
    return inputs + scratch + outputs + weights


def _pick_tile_rows(H, W, Wp, chans, c_out, itemsize, budget):
    """Largest TH with H % TH == 0, lane-dense output blocks and VMEM fit."""
    legal = [th for th in range(H, 0, -1)
             if H % th == 0 and ((th * W) % 128 == 0 or th == H)]
    for th in legal:                                   # biggest tile first
        if _vmem_need_bytes(th, W, Wp, chans, c_out, itemsize) <= budget:
            return th
    # TODO(synk): add width tiling for images so wide that even one output
    # row of the im2col scratch exceeds the VMEM budget.
    return legal[-1]


def upskip_conv_pallas(x_new, x_skip, weight, bias, *,
                       vmem_budget_bytes=24 << 20):
    """Fused (2x nearest upsample + [concat skip] + ReflectionPad2d(1)
    + Conv2d(3x3) + bias + ELU) for NCHW inputs; returns NCHW output."""
    N, c_up, h, w = x_new.shape
    H, W = 2 * h, 2 * w
    Wp = W + 2
    c_out = weight.shape[0]
    dtype = x_new.dtype
    itemsize = jnp.dtype(dtype).itemsize

    chans = [c_up] + ([x_skip.shape[1]] if x_skip is not None else [])
    K = 9 * sum(chans)

    TH = _pick_tile_rows(H, W, Wp, chans, c_out, itemsize, vmem_budget_bytes)
    R = H // TH

    # Padded-row/col -> source-index maps.  Row indices are emitted directly
    # in the overlapping (R, TH+2) halo layout, so ONE gather per source
    # builds the upsampled, reflection-padded, row-tiled slabs the kernel
    # consumes: no materialised upsample / concat / pad passes in HBM.
    p_rows = (jnp.arange(R, dtype=jnp.int32)[:, None] * TH
              + jnp.arange(TH + 2, dtype=jnp.int32)[None, :])     # (R, TH+2)
    q_cols = jnp.arange(Wp, dtype=jnp.int32)                      # (Wp,)

    # x_new: ReflectionPad2d(1) of the 2x-upsampled tensor == clamp((p-1)//2).
    up_rows = jnp.clip((p_rows - 1) // 2, 0, h - 1)
    up_cols = jnp.clip((q_cols - 1) // 2, 0, w - 1)
    xn = jnp.transpose(x_new, (0, 2, 3, 1))                       # (N,h,w,Cup)
    xn = jnp.take(xn, up_cols, axis=2)                            # (N,h,Wp,Cup)
    xn = jnp.take(xn, up_rows, axis=1)                            # (N,R,TH+2,Wp,Cup)
    srcs = [xn.reshape(N * R, TH + 2, Wp, c_up)]

    if x_skip is not None:
        c_sk = x_skip.shape[1]
        sk_rows = jnp.abs(p_rows - 1)
        sk_rows = jnp.where(sk_rows > H - 1, 2 * (H - 1) - sk_rows, sk_rows)
        sk_cols = jnp.abs(q_cols - 1)
        sk_cols = jnp.where(sk_cols > W - 1, 2 * (W - 1) - sk_cols, sk_cols)
        xs = jnp.transpose(x_skip, (0, 2, 3, 1))                  # (N,H,W,Csk)
        xs = jnp.take(xs, sk_cols, axis=2)
        xs = jnp.take(xs, sk_rows, axis=1)                        # (N,R,TH+2,Wp,Csk)
        srcs.append(xs.reshape(N * R, TH + 2, Wp, c_sk).astype(dtype))

    # Weights (Cout, Cin, 3, 3) -> source-major, dy/dx-major, channel-minor
    # columns, matching the im2col layout built inside the kernel.
    w_cols, off = [], 0
    for c in chans:
        w_s = weight[:, off:off + c, :, :]                        # (Cout,c,3,3)
        w_cols.append(jnp.transpose(w_s, (0, 2, 3, 1)).reshape(c_out, 9 * c))
        off += c
    w_t = jnp.concatenate(w_cols, axis=1).astype(dtype)           # (Cout, K)
    b2 = bias.reshape(c_out, 1).astype(jnp.float32)

    kernel = _make_conv3x3_bias_elu_kernel(tuple(chans), TH, W)

    in_specs = (
        [pl.BlockSpec((1, TH + 2, Wp, c), lambda n, r: (n * R + r, 0, 0, 0))
         for c in chans]
        + [pl.BlockSpec((c_out, K), lambda n, r: (0, 0)),
           pl.BlockSpec((c_out, 1), lambda n, r: (0, 0))])

    need = _vmem_need_bytes(TH, W, Wp, chans, c_out, itemsize)
    vmem_limit = int(min(48 << 20, max(4 * need, 32 << 20)))  # safe on v5e/v6e/v7x

    y_flat = pl.pallas_call(
        kernel,
        out_shape=jax.ShapeDtypeStruct((N, c_out, H * W), dtype),
        grid_spec=pltpu.PrefetchScalarGridSpec(
            num_scalar_prefetch=0,
            grid=(N, R),
            in_specs=in_specs,
            out_specs=pl.BlockSpec((1, c_out, TH * W), lambda n, r: (n, 0, r)),
            scratch_shapes=[pltpu.VMEM((TH * W, K), dtype)],
        ),
        compiler_params=pltpu.CompilerParams(
            dimension_semantics=("parallel", "parallel"),
            vmem_limit_bytes=vmem_limit),
    )(*srcs, w_t, b2)

    # (N, Cout, H*W) is already NCHW order: plain reshape, no transpose pass.
    return y_flat.reshape(N, c_out, H, W)


def up_skip_block_forward(params, pos, *xs):
    """Mirrors UpSkipBlock.forward (NCHW tensors, same tuple plumbing)."""
    if pos == 5:
        x_pre, x_new, x_skp, x_pst = xs[:pos - 1], xs[pos - 1], None, xs[pos:]
    else:
        x_pre, x_new, x_skp, x_pst = xs[:pos - 1], xs[pos - 1], xs[pos], xs[pos:]
    y = upskip_conv_pallas(x_new, x_skp, params['weight'], params['bias'])
    return x_pre + (y,) + x_pst


if __name__ == "__main__":
    key = jax.random.PRNGKey(0)
    pos, ch_in, ch_skip, ch_out = 2, 4, 4, 8
    N, Hs, Ws = 2, 8, 8  # x_new spatial size BEFORE the x2 upsample

    k0, k1, k2, k3, kw, kb = jax.random.split(key, 6)
    # Input tuple for pos=2: (x_pre0, x_new, x_skip, x_post)
    x_pre0 = jax.random.normal(k0, (N, ch_out, 32, 32), jnp.float32)
    x_new = jax.random.normal(k1, (N, ch_in, Hs, Ws), jnp.float32)
    x_skip = jax.random.normal(k2, (N, ch_skip, 2 * Hs, 2 * Ws), jnp.float32)
    x_post = jax.random.normal(k3, (N, 3, 4, 4), jnp.float32)

    weight = jax.random.normal(
        kw, (ch_out, ch_in + ch_skip, 3, 3), jnp.float32) * 0.1
    bias = jax.random.normal(kb, (ch_out,), jnp.float32) * 0.1
    params = {'weight': weight, 'bias': bias}

    fwd = jax.jit(up_skip_block_forward, static_argnums=(1,))
    out = jax.block_until_ready(fwd(params, pos, x_pre0, x_new, x_skip, x_post))

    # Tuple plumbing matches the PyTorch module.
    assert len(out) == 4
    y = out[pos - 1]
    assert y.shape == (N, ch_out, 2 * Hs, 2 * Ws)

    # Pure-JAX reference for the processed tensor (NCHW path, HIGHEST prec).
    x_up = jnp.repeat(jnp.repeat(x_new, 2, axis=2), 2, axis=3)
    x_cat = jnp.concatenate([x_up, x_skip], axis=1)
    x_padded = jnp.pad(x_cat, ((0, 0), (0, 0), (1, 1), (1, 1)), mode='reflect')
    ref = jax.lax.conv_general_dilated(
        x_padded, weight, window_strides=(1, 1), padding='VALID',
        dimension_numbers=('NCHW', 'OIHW', 'NCHW'),
        precision=jax.lax.Precision.HIGHEST) + bias[None, :, None, None]
    ref = jax.nn.elu(ref)

    max_err = float(jnp.max(jnp.abs(y - ref)))
    # Default MXU precision (bf16 operand truncation, f32 acc) -> loose tol.
    assert jnp.allclose(y, ref, atol=5e-2, rtol=5e-2), f"max_err={max_err}"

    # Force the row-tiled path (TH < H, R = 2) with a tiny VMEM budget and
    # re-check the halo / tiling logic against the same reference.
    tiled = jax.jit(functools.partial(upskip_conv_pallas,
                                      vmem_budget_bytes=96 * 1024))
    y2 = jax.block_until_ready(tiled(x_new, x_skip, weight, bias))
    max_err2 = float(jnp.max(jnp.abs(y2 - ref)))
    assert jnp.allclose(y2, ref, atol=5e-2, rtol=5e-2), f"max_err2={max_err2}"

    # Untouched tensors pass straight through.
    assert jnp.array_equal(out[0], x_pre0)
    assert jnp.array_equal(out[2], x_skip)
    assert jnp.array_equal(out[3], x_post)

    print("KERNEL_OK")
</pallas_src>

<mosaic_0001>
module attributes {stable_mosaic.version = 11 : i64} {
  func.func @kernel(%arg0: i32, %arg1: i32, %arg2: memref<1x18x18x4xf32, #tpu.memory_space<vmem>>, %arg3: memref<1x18x18x4xf32, #tpu.memory_space<vmem>>, %arg4: memref<8x72xf32, #tpu.memory_space<vmem>>, %arg5: memref<8x1xf32, #tpu.memory_space<vmem>>, %arg6: memref<1x8x256xf32, #tpu.memory_space<vmem>>, %arg7: memref<256x72xf32, #tpu.memory_space<vmem>>) attributes {dimension_semantics = [#tpu.dimension_semantics<parallel>, #tpu.dimension_semantics<parallel>], iteration_bounds = array<i64: 2, 1>, scalar_prefetch = 0 : i64, scratch_operands = 1 : i64, tpu.core_type = #tpu.core_type<tc>, window_params = [{transform_indices = @transform_0, window_bounds = array<i64: 1, 18, 18, 4>}, {transform_indices = @transform_1, window_bounds = array<i64: 1, 18, 18, 4>}, {pipeline_mode = #tpu.pipeline_mode<synchronous>, transform_indices = @transform_2, window_bounds = array<i64: 8, 72>}, {pipeline_mode = #tpu.pipeline_mode<synchronous>, transform_indices = @transform_3, window_bounds = array<i64: 8, 1>}, {transform_indices = @transform_4, window_bounds = array<i64: 1, 8, 256>}]} {
    %c0 = arith.constant 0 : index
    %c0_0 = arith.constant 0 : index
    %c0_1 = arith.constant 0 : index
    %c0_2 = arith.constant 0 : index
    %0 = vector.load %arg2[%c0, %c0_0, %c0_1, %c0_2] : memref<1x18x18x4xf32, #tpu.memory_space<vmem>>, vector<1x18x18x4xf32>
    %1 = vector.shape_cast %0 : vector<1x18x18x4xf32> to vector<18x18x4xf32>
    %2 = vector.extract_strided_slice %1 {offsets = [0, 0, 0], sizes = [16, 18, 4], strides = [1, 1, 1]} : vector<18x18x4xf32> to vector<16x18x4xf32>
    %3 = vector.extract_strided_slice %2 {offsets = [0, 0, 0], sizes = [16, 16, 4], strides = [1, 1, 1]} : vector<16x18x4xf32> to vector<16x16x4xf32>
    %4 = vector.extract_strided_slice %2 {offsets = [0, 1, 0], sizes = [16, 16, 4], strides = [1, 1, 1]} : vector<16x18x4xf32> to vector<16x16x4xf32>
    %5 = vector.extract_strided_slice %2 {offsets = [0, 2, 0], sizes = [16, 16, 4], strides = [1, 1, 1]} : vector<16x18x4xf32> to vector<16x16x4xf32>
    %6 = tpu.concatenate %3, %4, %5 in 2 : vector<16x16x4xf32>, vector<16x16x4xf32>, vector<16x16x4xf32> -> vector<16x16x12xf32>
    %7 = vector.shape_cast %6 : vector<16x16x12xf32> to vector<256x12xf32>
    %c0_3 = arith.constant 0 : index
    %c0_4 = arith.constant 0 : index
    %8 = vector.load %arg7[%c0_3, %c0_4] : memref<256x72xf32, #tpu.memory_space<vmem>>, vector<256x12xf32>
    tpu.vector_store %arg7[%c0_3, %c0_4], %7 {strides = array<i32>} : memref<256x72xf32, #tpu.memory_space<vmem>>, vector<256x12xf32>,
    %9 = vector.extract_strided_slice %1 {offsets = [1, 0, 0], sizes = [16, 18, 4], strides = [1, 1, 1]} : vector<18x18x4xf32> to vector<16x18x4xf32>
    %10 = vector.extract_strided_slice %9 {offsets = [0, 0, 0], sizes = [16, 16, 4], strides = [1, 1, 1]} : vector<16x18x4xf32> to vector<16x16x4xf32>
    %11 = vector.extract_strided_slice %9 {offsets = [0, 1, 0], sizes = [16, 16, 4], strides = [1, 1, 1]} : vector<16x18x4xf32> to vector<16x16x4xf32>
    %12 = vector.extract_strided_slice %9 {offsets = [0, 2, 0], sizes = [16, 16, 4], strides = [1, 1, 1]} : vector<16x18x4xf32> to vector<16x16x4xf32>
    %13 = tpu.concatenate %10, %11, %12 in 2 : vector<16x16x4xf32>, vector<16x16x4xf32>, vector<16x16x4xf32> -> vector<16x16x12xf32>
    %14 = vector.shape_cast %13 : vector<16x16x12xf32> to vector<256x12xf32>
    %c0_5 = arith.constant 0 : index
    %c12 = arith.constant 12 : index
    %15 = vector.load %arg7[%c0_5, %c12] : memref<256x72xf32, #tpu.memory_space<vmem>>, vector<256x12xf32>
    tpu.vector_store %arg7[%c0_5, %c12], %14 {strides = array<i32>} : memref<256x72xf32, #tpu.memory_space<vmem>>, vector<256x12xf32>,
    %16 = vector.extract_strided_slice %1 {offsets = [2, 0, 0], sizes = [16, 18, 4], strides = [1, 1, 1]} : vector<18x18x4xf32> to vector<16x18x4xf32>
    %17 = vector.extract_strided_slice %16 {offsets = [0, 0, 0], sizes = [16, 16, 4], strides = [1, 1, 1]} : vector<16x18x4xf32> to vector<16x16x4xf32>
    %18 = vector.extract_strided_slice %16 {offsets = [0, 1, 0], sizes = [16, 16, 4], strides = [1, 1, 1]} : vector<16x18x4xf32> to vector<16x16x4xf32>
    %19 = vector.extract_strided_slice %16 {offsets = [0, 2, 0], sizes = [16, 16, 4], strides = [1, 1, 1]} : vector<16x18x4xf32> to vector<16x16x4xf32>
    %20 = tpu.concatenate %17, %18, %19 in 2 : vector<16x16x4xf32>, vector<16x16x4xf32>, vector<16x16x4xf32> -> vector<16x16x12xf32>
    %21 = vector.shape_cast %20 : vector<16x16x12xf32> to vector<256x12xf32>
    %c0_6 = arith.constant 0 : index
    %c24 = arith.constant 24 : index
    %22 = vector.load %arg7[%c0_6, %c24] : memref<256x72xf32, #tpu.memory_space<vmem>>, vector<256x12xf32>
    tpu.vector_store %arg7[%c0_6, %c24], %21 {strides = array<i32>} : memref<256x72xf32, #tpu.memory_space<vmem>>, vector<256x12xf32>,
    %c0_7 = arith.constant 0 : index
    %c0_8 = arith.constant 0 : index
    %c0_9 = arith.constant 0 : index
    %c0_10 = arith.constant 0 : index
    %23 = vector.load %arg3[%c0_7, %c0_8, %c0_9, %c0_10] : memref<1x18x18x4xf32, #tpu.memory_space<vmem>>, vector<1x18x18x4xf32>
    %24 = vector.shape_cast %23 : vector<1x18x18x4xf32> to vector<18x18x4xf32>
    %25 = vector.extract_strided_slice %24 {offsets = [0, 0, 0], sizes = [16, 18, 4], strides = [1, 1, 1]} : vector<18x18x4xf32> to vector<16x18x4xf32>
    %26 = vector.extract_strided_slice %25 {offsets = [0, 0, 0], sizes = [16, 16, 4], strides = [1, 1, 1]} : vector<16x18x4xf32> to vector<16x16x4xf32>
    %27 = vector.extract_strided_slice %25 {offsets = [0, 1, 0], sizes = [16, 16, 4], strides = [1, 1, 1]} : vector<16x18x4xf32> to vector<16x16x4xf32>
    %28 = vector.extract_strided_slice %25 {offsets = [0, 2, 0], sizes = [16, 16, 4], strides = [1, 1, 1]} : vector<16x18x4xf32> to vector<16x16x4xf32>
    %29 = tpu.concatenate %26, %27, %28 in 2 : vector<16x16x4xf32>, vector<16x16x4xf32>, vector<16x16x4xf32> -> vector<16x16x12xf32>
    %30 = vector.shape_cast %29 : vector<16x16x12xf32> to vector<256x12xf32>
    %c0_11 = arith.constant 0 : index
    %c36 = arith.constant 36 : index
    %31 = vector.load %arg7[%c0_11, %c36] : memref<256x72xf32, #tpu.memory_space<vmem>>, vector<256x12xf32>
    tpu.vector_store %arg7[%c0_11, %c36], %30 {strides = array<i32>} : memref<256x72xf32, #tpu.memory_space<vmem>>, vector<256x12xf32>,
    %32 = vector.extract_strided_slice %24 {offsets = [1, 0, 0], sizes = [16, 18, 4], strides = [1, 1, 1]} : vector<18x18x4xf32> to vector<16x18x4xf32>
    %33 = vector.extract_strided_slice %32 {offsets = [0, 0, 0], sizes = [16, 16, 4], strides = [1, 1, 1]} : vector<16x18x4xf32> to vector<16x16x4xf32>
    %34 = vector.extract_strided_slice %32 {offsets = [0, 1, 0], sizes = [16, 16, 4], strides = [1, 1, 1]} : vector<16x18x4xf32> to vector<16x16x4xf32>
    %35 = vector.extract_strided_slice %32 {offsets = [0, 2, 0], sizes = [16, 16, 4], strides = [1, 1, 1]} : vector<16x18x4xf32> to vector<16x16x4xf32>
    %36 = tpu.concatenate %33, %34, %35 in 2 : vector<16x16x4xf32>, vector<16x16x4xf32>, vector<16x16x4xf32> -> vector<16x16x12xf32>
    %37 = vector.shape_cast %36 : vector<16x16x12xf32> to vector<256x12xf32>
    %c0_12 = arith.constant 0 : index
    %c48 = arith.constant 48 : index
    %38 = vector.load %arg7[%c0_12, %c48] : memref<256x72xf32, #tpu.memory_space<vmem>>, vector<256x12xf32>
    tpu.vector_store %arg7[%c0_12, %c48], %37 {strides = array<i32>} : memref<256x72xf32, #tpu.memory_space<vmem>>, vector<256x12xf32>,
    %39 = vector.extract_strided_slice %24 {offsets = [2, 0, 0], sizes = [16, 18, 4], strides = [1, 1, 1]} : vector<18x18x4xf32> to vector<16x18x4xf32>
    %40 = vector.extract_strided_slice %39 {offsets = [0, 0, 0], sizes = [16, 16, 4], strides = [1, 1, 1]} : vector<16x18x4xf32> to vector<16x16x4xf32>
    %41 = vector.extract_strided_slice %39 {offsets = [0, 1, 0], sizes = [16, 16, 4], strides = [1, 1, 1]} : vector<16x18x4xf32> to vector<16x16x4xf32>
    %42 = vector.extract_strided_slice %39 {offsets = [0, 2, 0], sizes = [16, 16, 4], strides = [1, 1, 1]} : vector<16x18x4xf32> to vector<16x16x4xf32>
    %43 = tpu.concatenate %40, %41, %42 in 2 : vector<16x16x4xf32>, vector<16x16x4xf32>, vector<16x16x4xf32> -> vector<16x16x12xf32>
    %44 = vector.shape_cast %43 : vector<16x16x12xf32> to vector<256x12xf32>
    %c0_13 = arith.constant 0 : index
    %c60 = arith.constant 60 : index
    %45 = vector.load %arg7[%c0_13, %c60] : memref<256x72xf32, #tpu.memory_space<vmem>>, vector<256x12xf32>
    tpu.vector_store %arg7[%c0_13, %c60], %44 {strides = array<i32>} : memref<256x72xf32, #tpu.memory_space<vmem>>, vector<256x12xf32>,
    %c0_14 = arith.constant 0 : index
    %c0_15 = arith.constant 0 : index
    %46 = vector.load %arg4[%c0_14, %c0_15] : memref<8x72xf32, #tpu.memory_space<vmem>>, vector<8x72xf32>
    %c0_16 = arith.constant 0 : index
    %c0_17 = arith.constant 0 : index
    %47 = vector.load %arg7[%c0_16, %c0_17] : memref<256x72xf32, #tpu.memory_space<vmem>>, vector<256x72xf32>
    %cst = arith.constant dense<0.000000e+00> : vector<8x256xf32>
    %48 = tpu.matmul %46, %47, %cst {dimension_numbers = #tpu.dot_dimension_numbers<[1], [1], [0], [0], [0, 0, 1, 0], [], []>} : vector<8x72xf32>, vector<256x72xf32>, vector<8x256xf32> -> vector<8x256xf32>
    %c0_18 = arith.constant 0 : index
    %c0_19 = arith.constant 0 : index
    %49 = vector.load %arg5[%c0_18, %c0_19] : memref<8x1xf32, #tpu.memory_space<vmem>>, vector<8x1xf32>
    %50 = vector.broadcast %49 : vector<8x1xf32> to vector<8x256xf32>
    %51 = arith.addf %48, %50 : vector<8x256xf32>
    %cst_20 = arith.constant 0.000000e+00 : f32
    %52 = vector.broadcast %cst_20 : f32 to vector<8x256xf32>
    %53 = arith.minimumf %51, %52 : vector<8x256xf32>
    %54 = math.exp %53 : vector<8x256xf32>
    %cst_21 = arith.constant 1.000000e+00 : f32
    %55 = vector.broadcast %cst_21 : f32 to vector<8x256xf32>
    %56 = arith.subf %54, %55 : vector<8x256xf32>
    %cst_22 = arith.constant 0.000000e+00 : f32
    %57 = vector.broadcast %cst_22 : f32 to vector<8x256xf32>
    %58 = arith.cmpf ogt, %51, %57 : vector<8x256xf32>
    %59 = arith.select %58, %51, %56 : vector<8x256xi1>, vector<8x256xf32>
    %60 = vector.shape_cast %59 : vector<8x256xf32> to vector<1x8x256xf32>
    %c0_23 = arith.constant 0 : index
    %c0_24 = arith.constant 0 : index
    %c0_25 = arith.constant 0 : index
    %61 = vector.load %arg6[%c0_23, %c0_24, %c0_25] : memref<1x8x256xf32, #tpu.memory_space<vmem>>, vector<1x8x256xf32>
    tpu.vector_store %arg6[%c0_23, %c0_24, %c0_25], %60 {strides = array<i32>} : memref<1x8x256xf32, #tpu.memory_space<vmem>>, vector<1x8x256xf32>,
    return
  }
  func.func @transform_0(%arg0: i32, %arg1: i32) -> (i32, i32, i32, i32) {
    %c1_i32 = arith.constant 1 : i32
    %0 = arith.muli %arg0, %c1_i32 : i32
    %1 = arith.addi %0, %arg1 : i32
    %c0_i32 = arith.constant 0 : i32
    %c0_i32_0 = arith.constant 0 : i32
    %c0_i32_1 = arith.constant 0 : i32
    %c0_i32_2 = arith.constant 0 : i32
    return %1, %c0_i32, %c0_i32_0, %c0_i32_1 : i32, i32, i32, i32
  }
  func.func @transform_1(%arg0: i32, %arg1: i32) -> (i32, i32, i32, i32) {
    %c1_i32 = arith.constant 1 : i32
    %0 = arith.muli %arg0, %c1_i32 : i32
    %1 = arith.addi %0, %arg1 : i32
    %c0_i32 = arith.constant 0 : i32
    %c0_i32_0 = arith.constant 0 : i32
    %c0_i32_1 = arith.constant 0 : i32
    %c0_i32_2 = arith.constant 0 : i32
    return %1, %c0_i32, %c0_i32_0, %c0_i32_1 : i32, i32, i32, i32
  }
  func.func @transform_2(%arg0: i32, %arg1: i32) -> (i32, i32) {
    %c0_i32 = arith.constant 0 : i32
    %c0_i32_0 = arith.constant 0 : i32
    %c0_i32_1 = arith.constant 0 : i32
    return %c0_i32, %c0_i32_0 : i32, i32
  }
  func.func @transform_3(%arg0: i32, %arg1: i32) -> (i32, i32) {
    %c0_i32 = arith.constant 0 : i32
    %c0_i32_0 = arith.constant 0 : i32
    %c0_i32_1 = arith.constant 0 : i32
    return %c0_i32, %c0_i32_0 : i32, i32
  }
  func.func @transform_4(%arg0: i32, %arg1: i32) -> (i32, i32, i32) {
    %c0_i32 = arith.constant 0 : i32
    %c0_i32_0 = arith.constant 0 : i32
    return %arg0, %c0_i32, %arg1 : i32, i32, i32
  }
}

</mosaic_0001>

<llo_original>
// kernel: up_skip_block_forward.1
$region0: #{up_skip_block_forward.1}
  #allocation0 [shape = 'u32[]', space=smem, size = 0x4, offset = 0x4, fixed_abs, tag = 'smem constant byte address 0x4 - core index']
  #allocation1 [shape = 'u32[144,128]{1,0:T(1,128)}', space=vmem, size = 0x12000, scoped, tag = 'internal scratch']
  #allocation2 [shape = 'f32[256,72]{1,0:T(8,128)}', space=vmem, size = 0x20000, scoped, tag = 'scratch operand']
  %s0 = inlined_call_operand.vmem [shape: f32[2,18,18,4], index: 0, kind: input, shape index: {}]
  %s1 = inlined_call_operand.vmem [shape: f32[2,18,18,4], index: 1, kind: input, shape index: {}]
  %s2 = inlined_call_operand.vmem [shape: f32[8,72], index: 2, kind: input, shape index: {}]
  %s3 = inlined_call_operand.vmem [shape: f32[8,1], index: 3, kind: input, shape index: {}]
  %s4 = inlined_call_operand.vmem [shape: f32[2,8,256], index: 4, kind: output, shape index: {}]
  %s5 = sld [smem:[#allocation0]]
  $region49: #{up_skip_block_forward.1} parent=0
    _
  %s7 = ssub.s32 1, %s5
  %s8 = scalar_select 0, %s7, %s5
  loop: start=0, step=1, limit=4
  $region2: #{up_skip_block_forward.1} parent=0 // loop_pre_header
    _
  $region3: #{up_skip_block_forward.1} parent=0 // loop_header
    %s10 = sphi 0, %s14
    %p11 = scmp.ge.s32.totalorder %s10, 4
    %s17 = sphi 0, %s29
    %s18 = sphi 0, %s25
    %s19 = sphi 0, %s17
    %s20 = sphi 0, %s18
    %s21 = sphi 0, %s19
    %s22 = sphi 0, %s20
    %s34 = sphi 0, %s36
    %s37 = sphi 0, %s34
    %s38 = sphi 0, %s37
    %s54 = sphi 0, %s38
    %s62 = sphi 0, %s64
    %s65 = sphi 0, %s62
    %s66 = sphi 0, %s65
    %s82 = sphi 0, %s66
    %s86 = sphi 0, %s86
    %s88 = sphi 0, %s86
    %s89 = sphi 0, %s88
    %s103 = sphi 0, %s89
    %s107 = sphi 0, %s107
    %s109 = sphi 0, %s107
    %s110 = sphi 0, %s109
    %s124 = sphi 0, %s110
    %s132 = sphi 0, %s134
    %s135 = sphi 0, %s132
    %s136 = sphi 0, %s135
    %s152 = sphi 0, %s136
  $region4: #{up_skip_block_forward.1} parent=0 // loop_header_branch
    %13 = sbr.rel (%p11) target = $region8
  $region5: #{up_skip_block_forward.1} parent=0 // loop_body
    %s15 = ssub.s32 %s10, 1
    %s16 = ssub.s32 %s10, 2
    %s23 = sadd.s32 1, %s18
    %p24 = scmp.ge.s32.totalorder %s23, 1
    %s25 = scalar_select %p24, 0, %s23
    %s26 = sadd.s32 1, %s17
    %s27 = scalar_select %p24, %s26, %s17
    %p28 = scmp.ge.s32.totalorder %s27, 2
    %s29 = scalar_select %p28, 0, %s27
    %s30 = sadd.s32 %s17, %s18
    %s31 = sadd.s32 %s29, %s25
    %s32 = ssub.s32 %s30, %s31
    %p33 = scmp.eq.s32.totalorder %s32, 0
    %s35 = sadd.s32 %s34, 1
    %s36 = scalar_select %p33, %s34, %s35
    %p39 = pneg %p33
    %p40 = scmp.eq.s32.totalorder %s10, 1
    %p41 = por %p39, %p40
    %p42 = scmp.ne.s32.totalorder %s34, %s37
    %p43 = scmp.eq.s32.totalorder %s10, 0
    %p44 = por %p42, %p43
    %p45 = scmp.ne.s32.totalorder %s34, %s37
    %p46 = scmp.eq.s32.totalorder %s15, 1
    %p47 = por %p45, %p46
    %p48 = scmp.ne.s32.totalorder %s37, %s38
    %p49 = scmp.eq.s32.totalorder %s15, 0
    %p50 = por %p48, %p49
    %p51 = scmp.ne.s32.totalorder %s37, %s38
    %p52 = scmp.eq.s32.totalorder %s16, 1
    %p53 = por %p51, %p52
    %p55 = scmp.ne.s32.totalorder %s38, %s54
    %p56 = scmp.eq.s32.totalorder %s16, 0
    %p57 = por %p55, %p56
    %s58 = sadd.s32 %s17, %s18
    %s59 = sadd.s32 %s29, %s25
    %s60 = ssub.s32 %s58, %s59
    %p61 = scmp.eq.s32.totalorder %s60, 0
    %s63 = sadd.s32 %s62, 1
    %s64 = scalar_select %p61, %s62, %s63
    %p67 = pneg %p61
    %p68 = scmp.eq.s32.totalorder %s10, 1
    %p69 = por %p67, %p68
    %p70 = scmp.ne.s32.totalorder %s62, %s65
    %p71 = scmp.eq.s32.totalorder %s10, 0
    %p72 = por %p70, %p71
    %p73 = scmp.ne.s32.totalorder %s62, %s65
    %p74 = scmp.eq.s32.totalorder %s15, 1
    %p75 = por %p73, %p74
    %p76 = scmp.ne.s32.totalorder %s65, %s66
    %p77 = scmp.eq.s32.totalorder %s15, 0
    %p78 = por %p76, %p77
    %p79 = scmp.ne.s32.totalorder %s65, %s66
    %p80 = scmp.eq.s32.totalorder %s16, 1
    %p81 = por %p79, %p80
    %p83 = scmp.ne.s32.totalorder %s66, %s82
    %p84 = scmp.eq.s32.totalorder %s16, 0
    %p85 = por %p83, %p84
    %s87 = sadd.s32 %s86, 1
    %p90 = scmp.eq.s32.totalorder %s10, 1
    %p91 = scmp.ne.s32.totalorder %s86, %s88
    %p92 = scmp.eq.s32.totalorder %s10, 0
    %p93 = por %p91, %p92
    %p94 = scmp.ne.s32.totalorder %s86, %s88
    %p95 = scmp.eq.s32.totalorder %s15, 1
    %p96 = por %p94, %p95
    %p97 = scmp.ne.s32.totalorder %s88, %s89
    %p98 = scmp.eq.s32.totalorder %s15, 0
    %p99 = por %p97, %p98
    %p100 = scmp.ne.s32.totalorder %s88, %s89
    %p101 = scmp.eq.s32.totalorder %s16, 1
    %p102 = por %p100, %p101
    %p104 = scmp.ne.s32.totalorder %s89, %s103
    %p105 = scmp.eq.s32.totalorder %s16, 0
    %p106 = por %p104, %p105
    %s108 = sadd.s32 %s107, 1
    %p111 = scmp.eq.s32.totalorder %s10, 1
    %p112 = scmp.ne.s32.totalorder %s107, %s109
    %p113 = scmp.eq.s32.totalorder %s10, 0
    %p114 = por %p112, %p113
    %p115 = scmp.ne.s32.totalorder %s107, %s109
    %p116 = scmp.eq.s32.totalorder %s15, 1
    %p117 = por %p115, %p116
    %p118 = scmp.ne.s32.totalorder %s109, %s110
    %p119 = scmp.eq.s32.totalorder %s15, 0
    %p120 = por %p118, %p119
    %p121 = scmp.ne.s32.totalorder %s109, %s110
    %p122 = scmp.eq.s32.totalorder %s16, 1
    %p123 = por %p121, %p122
    %p125 = scmp.ne.s32.totalorder %s110, %s124
    %p126 = scmp.eq.s32.totalorder %s16, 0
    %p127 = por %p125, %p126
    %s128 = ssub.s32 %s17, %s29
    %s129 = ssub.s32 %s18, %s25
    %s130 = sor.u32 %s128, %s129
    %p131 = scmp.eq.s32.totalorder %s130, 0
    %s133 = sadd.s32 %s132, 1
    %s134 = scalar_select %p131, %s132, %s133
    %p137 = pneg %p131
    %p138 = scmp.eq.s32.totalorder %s10, 1
    %p139 = por %p137, %p138
    %p140 = scmp.ne.s32.totalorder %s132, %s135
    %p141 = scmp.eq.s32.totalorder %s10, 0
    %p142 = por %p140, %p141
    %p143 = scmp.ne.s32.totalorder %s132, %s135
    %p144 = scmp.eq.s32.totalorder %s15, 1
    %p145 = por %p143, %p144
    %p146 = scmp.ne.s32.totalorder %s135, %s136
    %p147 = scmp.eq.s32.totalorder %s15, 0
    %p148 = por %p146, %p147
    %p149 = scmp.ne.s32.totalorder %s135, %s136
    %p150 = scmp.eq.s32.totalorder %s16, 1
    %p151 = por %p149, %p150
    %p153 = scmp.ne.s32.totalorder %s136, %s152
    %p154 = scmp.eq.s32.totalorder %s16, 0
    %p155 = por %p153, %p154
    %p156 = scmp.le.s32.totalorder 1, %s10
    %p157 = scmp.lt.s32.totalorder %s10, 3
    %p158 = pnand %p156, %p157
    %p159 = pneg %p158
    // Predicated region
    $region9: #{up_skip_block_forward.1} parent=5 // pred_check
      _
    $region10: #{up_skip_block_forward.1} parent=5 // pred_check_branch
      %161 = sbr.rel (%p158) target = $region12
    $region11: #{up_skip_block_forward.1} parent=5 // pred_region
      %s162 = ssub.s32 %s10, 1
      // Predicated region
      $region13: #{up_skip_block_forward.1} parent=11 // pred_check
        %p163 = pneg %p99
      $region14: #{up_skip_block_forward.1} parent=11 // pred_check_branch
        %165 = sbr.rel (%p163) target = $region16
      $region15: #{up_skip_block_forward.1} parent=11 // pred_region
        _
      $region16: #{up_skip_block_forward.1} parent=11 // pred_fallthru
        _
      // Predicated region
      $region17: #{up_skip_block_forward.1} parent=11 // pred_check
        %p166 = pneg %p120
      $region18: #{up_skip_block_forward.1} parent=11 // pred_check_branch
        %168 = sbr.rel (%p166) target = $region20
      $region19: #{up_skip_block_forward.1} parent=11 // pred_region
        _
      $region20: #{up_skip_block_forward.1} parent=11 // pred_fallthru
        _
    $region12: #{up_skip_block_forward.1} parent=5 // pred_fallthru
      _
    %p169 = scmp.lt.s32.totalorder %s10, 2
    // Predicated region
    $region21: #{up_skip_block_forward.1} parent=5 // pred_check
      %p170 = pneg %p169
    $region22: #{up_skip_block_forward.1} parent=5 // pred_check_branch
      %172 = sbr.rel (%p170) target = $region24
    $region23: #{up_skip_block_forward.1} parent=5 // pred_region
      // Predicated region
      $region25: #{up_skip_block_forward.1} parent=23 // pred_check
        %p173 = pneg %p44
      $region26: #{up_skip_block_forward.1} parent=23 // pred_check_branch
        %175 = sbr.rel (%p173) target = $region28
      $region27: #{up_skip_block_forward.1} parent=23 // pred_region
        %s176 = sadd.s32 %s17, %s18
        %p177 = scmp.lt.s32.totalorder %s176, 1
        %s178 = scalar_select %p177, %s176, 1
        %s179 = smul.addr %s178, 54
        %s180 = smul.addr %s179, 8
        %s181 = scalar_lea.vmem %s0, %s180
        %s182 = sadd.s32 %s17, %s18
      $region28: #{up_skip_block_forward.1} parent=23 // pred_fallthru
        _
      // Predicated region
      $region29: #{up_skip_block_forward.1} parent=23 // pred_check
        %p183 = pneg %p72
      $region30: #{up_skip_block_forward.1} parent=23 // pred_check_branch
        %185 = sbr.rel (%p183) target = $region32
      $region31: #{up_skip_block_forward.1} parent=23 // pred_region
        %s186 = sadd.s32 %s17, %s18
        %p187 = scmp.lt.s32.totalorder %s186, 1
        %s188 = scalar_select %p187, %s186, 1
        %s189 = smul.addr %s188, 54
        %s190 = smul.addr %s189, 8
        %s191 = scalar_lea.vmem %s1, %s190
        %s192 = sadd.s32 %s17, %s18
      $region32: #{up_skip_block_forward.1} parent=23 // pred_fallthru
        _
    $region24: #{up_skip_block_forward.1} parent=5 // pred_fallthru
      _
    %p193 = scmp.le.s32.totalorder 1, %s10
    %p194 = scmp.lt.s32.totalorder %s10, 3
    %p195 = pnand %p193, %p194
    %p196 = pneg %p195
    // Predicated region
    $region33: #{up_skip_block_forward.1} parent=5 // pred_check
      _
    $region34: #{up_skip_block_forward.1} parent=5 // pred_check_branch
      %198 = sbr.rel (%p195) target = $region36
    $region35: #{up_skip_block_forward.1} parent=5 // pred_region
      %s199 = ssub.s32 %s10, 1
      %s200 = sadd.s32 %s19, %s20
      %p201 = scmp.lt.s32.totalorder %s200, 1
      %s202 = scalar_select %p201, %s200, 1
      %s203 = smul.addr %s202, 54
      %s204 = smul.addr %s203, 8
      %s205 = scalar_lea.vmem %s0, %s204
      %p206 = pneg %p50
      %p207 = pneg %p47
      %s208 = sadd.s32 %s19, %s20
      %p209 = scmp.lt.s32.totalorder %s208, 1
      %s210 = scalar_select %p209, %s208, 1
      %s211 = smul.addr %s210, 54
      %s212 = smul.addr %s211, 8
      %s213 = scalar_lea.vmem %s1, %s212
      %p214 = pneg %p78
      %p215 = pneg %p75
      %p216 = pneg %p99
      %p217 = pneg %p96
      %p218 = pneg %p120
      %p219 = pneg %p117
      %p220 = pneg %p148
      %p221 = pneg %p145
      %s222 = smul.u32 2, %s20
      %p223 = scmp.lt.s32.totalorder %s19, 1
      %s224 = scalar_select %p223, %s19, 1
      %p225 = scmp.lt.s32.totalorder %s222, 1
      %s226 = scalar_select %p225, %s222, 1
      %s227 = smul.addr %s224, 2
      %s228 = sadd.s32 %s226, %s227
      %s229 = smul.addr %s228, 8
      %s230 = scalar_lea.vmem %s4, %s229
      %s231 = sadd.s32 %s19, %s20
      %p232 = scmp.lt.s32.totalorder %s231, 1
      %s233 = scalar_select %p232, %s231, 1
      %s234 = smul.addr %s233, 54
      %s235 = smul.addr %s234, 8
      %s236 = scalar_lea.vmem %s0, %s235
      %s237 = sadd.s32 %s19, %s20
      %s238 = sadd.s32 %s19, %s20
      %p239 = scmp.lt.s32.totalorder %s238, 1
      %s240 = scalar_select %p239, %s238, 1
      %s241 = smul.addr %s240, 54
      %s242 = smul.addr %s241, 8
      %s243 = scalar_lea.vmem %s1, %s242
      %s244 = sadd.s32 %s19, %s20
      %s245 = smul.u32 2, %s20
      %p246 = scmp.lt.s32.totalorder %s19, 1
      %s247 = scalar_select %p246, %s19, 1
      %p248 = scmp.lt.s32.totalorder %s245, 1
      %s249 = scalar_select %p248, %s245, 1
      %s250 = smul.addr %s247, 2
      %s251 = sadd.s32 %s249, %s250
      %s252 = smul.addr %s251, 8
      %s253 = scalar_lea.vmem %s4, %s252
      %s254 = smul.u32 2, %s20
      %v255 = vld [vmem:[%s236] sm:$0xff]
      %v256 = vld [vmem:[%s236 + $0x8] sm:$0xff]
      %v257 = vld [vmem:[%s236 + $0x10] sm:$0x3]
      %v258 = vld [vmem:[%s236 + $0x18] sm:$0xff]
      %v259 = vld [vmem:[%s236 + $0x20] sm:$0xff]
      %v260 = vld [vmem:[%s236 + $0x28] sm:$0x3]
      %v261 = vld [vmem:[%s236 + $0x30] sm:$0xff]
      %v262 = vld [vmem:[%s236 + $0x38] sm:$0xff]
      %v263 = vld [vmem:[%s236 + $0x40] sm:$0x3]
      %v264 = vld [vmem:[%s236 + $0x48] sm:$0xff]
      %v265 = vld [vmem:[%s236 + $0x50] sm:$0xff]
      %v266 = vld [vmem:[%s236 + $0x58] sm:$0x3]
      %v267 = vld [vmem:[%s236 + $0x60] sm:$0xff]
      %v268 = vld [vmem:[%s236 + $0x68] sm:$0xff]
      %v269 = vld [vmem:[%s236 + $0x70] sm:$0x3]
      %v270 = vld [vmem:[%s236 + $0x78] sm:$0xff]
      %v271 = vld [vmem:[%s236 + $0x80] sm:$0xff]
      %v272 = vld [vmem:[%s236 + $0x88] sm:$0x3]
      %v273 = vld [vmem:[%s236 + $0x90] sm:$0xff]
      %v274 = vld [vmem:[%s236 + $0x98] sm:$0xff]
      %v275 = vld [vmem:[%s236 + $0xa0] sm:$0x3]
      %v276 = vld [vmem:[%s236 + $0xa8] sm:$0xff]
      %v277 = vld [vmem:[%s236 + $0xb0] sm:$0xff]
      %v278 = vld [vmem:[%s236 + $0xb8] sm:$0x3]
      %v279 = vld [vmem:[%s236 + $0xc0] sm:$0xff]
      %v280 = vld [vmem:[%s236 + $0xc8] sm:$0xff]
      %v281 = vld [vmem:[%s236 + $0xd0] sm:$0x3]
      %v282 = vld [vmem:[%s236 + $0xd8] sm:$0xff]
      %v283 = vld [vmem:[%s236 + $0xe0] sm:$0xff]
      %v284 = vld [vmem:[%s236 + $0xe8] sm:$0x3]
      %v285 = vld [vmem:[%s236 + $0xf0] sm:$0xff]
      %v286 = vld [vmem:[%s236 + $0xf8] sm:$0xff]
      %v287 = vld [vmem:[%s236 + $0x100] sm:$0x3]
      %v288 = vld [vmem:[%s236 + $0x108] sm:$0xff]
      %v289 = vld [vmem:[%s236 + $0x110] sm:$0xff]
      %v290 = vld [vmem:[%s236 + $0x118] sm:$0x3]
      %v291 = vld [vmem:[%s236 + $0x120] sm:$0xff]
      %v292 = vld [vmem:[%s236 + $0x128] sm:$0xff]
      %v293 = vld [vmem:[%s236 + $0x130] sm:$0x3]
      %v294 = vld [vmem:[%s236 + $0x138] sm:$0xff]
      %v295 = vld [vmem:[%s236 + $0x140] sm:$0xff]
      %v296 = vld [vmem:[%s236 + $0x148] sm:$0x3]
      %v297 = vld [vmem:[%s236 + $0x150] sm:$0xff]
      %v298 = vld [vmem:[%s236 + $0x158] sm:$0xff]
      %v299 = vld [vmem:[%s236 + $0x160] sm:$0x3]
      %v300 = vld [vmem:[%s236 + $0x168] sm:$0xff]
      %v301 = vld [vmem:[%s236 + $0x170] sm:$0xff]
      %v302 = vld [vmem:[%s236 + $0x178] sm:$0x3]
      %v303 = vld [vmem:[%s236 + $0x180] sm:$0xff]
      %v304 = vld [vmem:[%s236 + $0x188] sm:$0xff]
      %v305 = vld [vmem:[%s236 + $0x190] sm:$0x3]
      %v306 = vld [vmem:[%s236 + $0x198] sm:$0xff]
      %v307 = vld [vmem:[%s236 + $0x1a0] sm:$0xff]
      %v308 = vld [vmem:[%s236 + $0x1a8] sm:$0x3]
      %vm357 = vcmask 1046528
      %v358 = vrot.slane %v255, 1
      %v359 = vrot.slane %v256, 1
      %v360 = vsel %vm357, %v358, %v359
      %v361 = vrot.slane %v257, 1
      %v362 = vsel %vm357, %v359, %v361
      %v363 = vrot.slane %v258, 1
      %v364 = vrot.slane %v259, 1
      %v365 = vsel %vm357, %v363, %v364
      %v366 = vrot.slane %v260, 1
      %v367 = vsel %vm357, %v364, %v366
      %v368 = vrot.slane %v261, 1
      %v369 = vrot.slane %v262, 1
      %v370 = vsel %vm357, %v368, %v369
      %v371 = vrot.slane %v263, 1
      %v372 = vsel %vm357, %v369, %v371
      %v373 = vrot.slane %v264, 1
      %v374 = vrot.slane %v265, 1
      %v375 = vsel %vm357, %v373, %v374
      %v376 = vrot.slane %v266, 1
      %v377 = vsel %vm357, %v374, %v376
      %v378 = vrot.slane %v267, 1
      %v379 = vrot.slane %v268, 1
      %v380 = vsel %vm357, %v378, %v379
      %v381 = vrot.slane %v269, 1
      %v382 = vsel %vm357, %v379, %v381
      %v383 = vrot.slane %v270, 1
      %v384 = vrot.slane %v271, 1
      %v385 = vsel %vm357, %v383, %v384
      %v386 = vrot.slane %v272, 1
      %v387 = vsel %vm357, %v384, %v386
      %v388 = vrot.slane %v273, 1
      %v389 = vrot.slane %v274, 1
      %v390 = vsel %vm357, %v388, %v389
      %v391 = vrot.slane %v275, 1
      %v392 = vsel %vm357, %v389, %v391
      %v393 = vrot.slane %v276, 1
      %v394 = vrot.slane %v277, 1
      %v395 = vsel %vm357, %v393, %v394
      %v396 = vrot.slane %v278, 1
      %v397 = vsel %vm357, %v394, %v396
      %v398 = vrot.slane %v279, 1
      %v399 = vrot.slane %v280, 1
      %v400 = vsel %vm357, %v398, %v399
      %v401 = vrot.slane %v281, 1
      %v402 = vsel %vm357, %v399, %v401
      %v403 = vrot.slane %v282, 1
      %v404 = vrot.slane %v283, 1
      %v405 = vsel %vm357, %v403, %v404
      %v406 = vrot.slane %v284, 1
      %v407 = vsel %vm357, %v404, %v406
      %v408 = vrot.slane %v285, 1
      %v409 = vrot.slane %v286, 1
      %v410 = vsel %vm357, %v408, %v409
      %v411 = vrot.slane %v287, 1
      %v412 = vsel %vm357, %v409, %v411
      %v413 = vrot.slane %v288, 1
      %v414 = vrot.slane %v289, 1
      %v415 = vsel %vm357, %v413, %v414
      %v416 = vrot.slane %v290, 1
      %v417 = vsel %vm357, %v414, %v416
      %v418 = vrot.slane %v291, 1
      %v419 = vrot.slane %v292, 1
      %v420 = vsel %vm357, %v418, %v419
      %v421 = vrot.slane %v293, 1
      %v422 = vsel %vm357, %v419, %v421
      %v423 = vrot.slane %v294, 1
      %v424 = vrot.slane %v295, 1
      %v425 = vsel %vm357, %v423, %v424
      %v426 = vrot.slane %v296, 1
      %v427 = vsel %vm357, %v424, %v426
      %v428 = vrot.slane %v297, 1
      %v429 = vrot.slane %v298, 1
      %v430 = vsel %vm357, %v428, %v429
      %v431 = vrot.slane %v299, 1
      %v432 = vsel %vm357, %v429, %v431
      %v433 = vrot.slane %v300, 1
      %v434 = vrot.slane %v301, 1
      %v435 = vsel %vm357, %v433, %v434
      %v436 = vrot.slane %v302, 1
      %v437 = vsel %vm357, %v434, %v436
      %438 = vrot.lane.b32.xlu0 %v360, 4
      %v439 = vpop.permute.xlu0 %438
      %440 = vrot.lane.b32.xlu0 %v362, 4
      %v441 = vpop.permute.xlu0 %440
      %442 = vrot.lane.b32.xlu0 %v365, 4
      %v443 = vpop.permute.xlu0 %442
      %444 = vrot.lane.b32.xlu0 %v367, 4
      %v445 = vpop.permute.xlu0 %444
      %446 = vrot.lane.b32.xlu0 %v370, 4
      %v447 = vpop.permute.xlu0 %446
      %448 = vrot.lane.b32.xlu0 %v372, 4
      %v449 = vpop.permute.xlu0 %448
      %450 = vrot.lane.b32.xlu0 %v375, 4
      %v451 = vpop.permute.xlu0 %450
      %452 = vrot.lane.b32.xlu0 %v377, 4
      %v453 = vpop.permute.xlu0 %452
      %454 = vrot.lane.b32.xlu0 %v380, 4
      %v455 = vpop.permute.xlu0 %454
      %456 = vrot.lane.b32.xlu0 %v382, 4
      %v457 = vpop.permute.xlu0 %456
      %458 = vrot.lane.b32.xlu0 %v385, 4
      %v459 = vpop.permute.xlu0 %458
      %460 = vrot.lane.b32.xlu0 %v387, 4
      %v461 = vpop.permute.xlu0 %460
      %462 = vrot.lane.b32.xlu0 %v390, 4
      %v463 = vpop.permute.xlu0 %462
      %464 = vrot.lane.b32.xlu0 %v392, 4
      %v465 = vpop.permute.xlu0 %464
      %466 = vrot.lane.b32.xlu0 %v395, 4
      %v467 = vpop.permute.xlu0 %466
      %468 = vrot.lane.b32.xlu0 %v397, 4
      %v469 = vpop.permute.xlu0 %468
      %470 = vrot.lane.b32.xlu0 %v400, 4
      %v471 = vpop.permute.xlu0 %470
      %472 = vrot.lane.b32.xlu0 %v402, 4
      %v473 = vpop.permute.xlu0 %472
      %474 = vrot.lane.b32.xlu0 %v405, 4
      %v475 = vpop.permute.xlu0 %474
      %476 = vrot.lane.b32.xlu0 %v407, 4
      %v477 = vpop.permute.xlu0 %476
      %478 = vrot.lane.b32.xlu0 %v410, 4
      %v479 = vpop.permute.xlu0 %478
      %480 = vrot.lane.b32.xlu0 %v412, 4
      %v481 = vpop.permute.xlu0 %480
      %482 = vrot.lane.b32.xlu0 %v415, 4
      %v483 = vpop.permute.xlu0 %482
      %484 = vrot.lane.b32.xlu0 %v417, 4
      %v485 = vpop.permute.xlu0 %484
      %486 = vrot.lane.b32.xlu0 %v420, 4
      %v487 = vpop.permute.xlu0 %486
      %488 = vrot.lane.b32.xlu0 %v422, 4
      %v489 = vpop.permute.xlu0 %488
      %490 = vrot.lane.b32.xlu0 %v425, 4
      %v491 = vpop.permute.xlu0 %490
      %492 = vrot.lane.b32.xlu0 %v427, 4
      %v493 = vpop.permute.xlu0 %492
      %494 = vrot.lane.b32.xlu0 %v430, 4
      %v495 = vpop.permute.xlu0 %494
      %496 = vrot.lane.b32.xlu0 %v432, 4
      %v497 = vpop.permute.xlu0 %496
      %498 = vrot.lane.b32.xlu0 %v435, 4
      %v499 = vpop.permute.xlu0 %498
      %500 = vrot.lane.b32.xlu0 %v437, 4
      %v501 = vpop.permute.xlu0 %500
      %vm534 = vcmask 1045504
      %v535 = vrot.slane %v255, 2
      %v536 = vrot.slane %v256, 2
      %v537 = vsel %vm534, %v535, %v536
      %v538 = vrot.slane %v257, 2
      %v539 = vsel %vm534, %v536, %v538
      %v540 = vrot.slane %v258, 2
      %v541 = vrot.slane %v259, 2
      %v542 = vsel %vm534, %v540, %v541
      %v543 = vrot.slane %v260, 2
      %v544 = vsel %vm534, %v541, %v543
      %v545 = vrot.slane %v261, 2
      %v546 = vrot.slane %v262, 2
      %v547 = vsel %vm534, %v545, %v546
      %v548 = vrot.slane %v263, 2
      %v549 = vsel %vm534, %v546, %v548
      %v550 = vrot.slane %v264, 2
      %v551 = vrot.slane %v265, 2
      %v552 = vsel %vm534, %v550, %v551
      %v553 = vrot.slane %v266, 2
      %v554 = vsel %vm534, %v551, %v553
      %v555 = vrot.slane %v267, 2
      %v556 = vrot.slane %v268, 2
      %v557 = vsel %vm534, %v555, %v556
      %v558 = vrot.slane %v269, 2
      %v559 = vsel %vm534, %v556, %v558
      %v560 = vrot.slane %v270, 2
      %v561 = vrot.slane %v271, 2
      %v562 = vsel %vm534, %v560, %v561
      %v563 = vrot.slane %v272, 2
      %v564 = vsel %vm534, %v561, %v563
      %v565 = vrot.slane %v273, 2
      %v566 = vrot.slane %v274, 2
      %v567 = vsel %vm534, %v565, %v566
      %v568 = vrot.slane %v275, 2
      %v569 = vsel %vm534, %v566, %v568
      %v570 = vrot.slane %v276, 2
      %v571 = vrot.slane %v277, 2
      %v572 = vsel %vm534, %v570, %v571
      %v573 = vrot.slane %v278, 2
      %v574 = vsel %vm534, %v571, %v573
      %v575 = vrot.slane %v279, 2
      %v576 = vrot.slane %v280, 2
      %v577 = vsel %vm534, %v575, %v576
      %v578 = vrot.slane %v281, 2
      %v579 = vsel %vm534, %v576, %v578
      %v580 = vrot.slane %v282, 2
      %v581 = vrot.slane %v283, 2
      %v582 = vsel %vm534, %v580, %v581
      %v583 = vrot.slane %v284, 2
      %v584 = vsel %vm534, %v581, %v583
      %v585 = vrot.slane %v285, 2
      %v586 = vrot.slane %v286, 2
      %v587 = vsel %vm534, %v585, %v586
      %v588 = vrot.slane %v287, 2
      %v589 = vsel %vm534, %v586, %v588
      %v590 = vrot.slane %v288, 2
      %v591 = vrot.slane %v289, 2
      %v592 = vsel %vm534, %v590, %v591
      %v593 = vrot.slane %v290, 2
      %v594 = vsel %vm534, %v591, %v593
      %v595 = vrot.slane %v291, 2
      %v596 = vrot.slane %v292, 2
      %v597 = vsel %vm534, %v595, %v596
      %v598 = vrot.slane %v293, 2
      %v599 = vsel %vm534, %v596, %v598
      %v600 = vrot.slane %v294, 2
      %v601 = vrot.slane %v295, 2
      %v602 = vsel %vm534, %v600, %v601
      %v603 = vrot.slane %v296, 2
      %v604 = vsel %vm534, %v601, %v603
      %v605 = vrot.slane %v297, 2
      %v606 = vrot.slane %v298, 2
      %v607 = vsel %vm534, %v605, %v606
      %v608 = vrot.slane %v299, 2
      %v609 = vsel %vm534, %v606, %v608
      %v610 = vrot.slane %v300, 2
      %v611 = vrot.slane %v301, 2
      %v612 = vsel %vm534, %v610, %v611
      %v613 = vrot.slane %v302, 2
      %v614 = vsel %vm534, %v611, %v613
      %615 = vrot.lane.b32.xlu0 %v537, 8
      %v616 = vpop.permute.xlu0 %615
      %617 = vrot.lane.b32.xlu0 %v539, 8
      %v618 = vpop.permute.xlu0 %617
      %619 = vrot.lane.b32.xlu0 %v542, 8
      %v620 = vpop.permute.xlu0 %619
      %621 = vrot.lane.b32.xlu0 %v544, 8
      %v622 = vpop.permute.xlu0 %621
      %623 = vrot.lane.b32.xlu0 %v547, 8
      %v624 = vpop.permute.xlu0 %623
      %625 = vrot.lane.b32.xlu0 %v549, 8
      %v626 = vpop.permute.xlu0 %625
      %627 = vrot.lane.b32.xlu0 %v552, 8
      %v628 = vpop.permute.xlu0 %627
      %629 = vrot.lane.b32.xlu0 %v554, 8
      %v630 = vpop.permute.xlu0 %629
      %631 = vrot.lane.b32.xlu0 %v557, 8
      %v632 = vpop.permute.xlu0 %631
      %633 = vrot.lane.b32.xlu0 %v559, 8
      %v634 = vpop.permute.xlu0 %633
      %635 = vrot.lane.b32.xlu0 %v562, 8
      %v636 = vpop.permute.xlu0 %635
      %637 = vrot.lane.b32.xlu0 %v564, 8
      %v638 = vpop.permute.xlu0 %637
      %639 = vrot.lane.b32.xlu0 %v567, 8
      %v640 = vpop.permute.xlu0 %639
      %641 = vrot.lane.b32.xlu0 %v569, 8
      %v642 = vpop.permute.xlu0 %641
      %643 = vrot.lane.b32.xlu0 %v572, 8
      %v644 = vpop.permute.xlu0 %643
      %645 = vrot.lane.b32.xlu0 %v574, 8
      %v646 = vpop.permute.xlu0 %645
      %647 = vrot.lane.b32.xlu0 %v577, 8
      %v648 = vpop.permute.xlu0 %647
      %649 = vrot.lane.b32.xlu0 %v579, 8
      %v650 = vpop.permute.xlu0 %649
      %651 = vrot.lane.b32.xlu0 %v582, 8
      %v652 = vpop.permute.xlu0 %651
      %653 = vrot.lane.b32.xlu0 %v584, 8
      %v654 = vpop.permute.xlu0 %653
      %655 = vrot.lane.b32.xlu0 %v587, 8
      %v656 = vpop.permute.xlu0 %655
      %657 = vrot.lane.b32.xlu0 %v589, 8
      %v658 = vpop.permute.xlu0 %657
      %659 = vrot.lane.b32.xlu0 %v592, 8
      %v660 = vpop.permute.xlu0 %659
      %661 = vrot.lane.b32.xlu0 %v594, 8
      %v662 = vpop.permute.xlu0 %661
      %663 = vrot.lane.b32.xlu0 %v597, 8
      %v664 = vpop.permute.xlu0 %663
      %665 = vrot.lane.b32.xlu0 %v599, 8
      %v666 = vpop.permute.xlu0 %665
      %667 = vrot.lane.b32.xlu0 %v602, 8
      %v668 = vpop.permute.xlu0 %667
      %669 = vrot.lane.b32.xlu0 %v604, 8
      %v670 = vpop.permute.xlu0 %669
      %671 = vrot.lane.b32.xlu0 %v607, 8
      %v672 = vpop.permute.xlu0 %671
      %673 = vrot.lane.b32.xlu0 %v609, 8
      %v674 = vpop.permute.xlu0 %673
      %675 = vrot.lane.b32.xlu0 %v612, 8
      %v676 = vpop.permute.xlu0 %675
      %677 = vrot.lane.b32.xlu0 %v614, 8
      %v678 = vpop.permute.xlu0 %677
      %vm711 = vcmask 31744
      %v712 = vsel %vm711, %v255, %v439
      %v713 = vsel %vm711, %v256, %v441
      %v714 = vsel %vm711, %v258, %v443
      %v715 = vsel %vm711, %v259, %v445
      %v716 = vsel %vm711, %v261, %v447
      %v717 = vsel %vm711, %v262, %v449
      %v718 = vsel %vm711, %v264, %v451
      %v719 = vsel %vm711, %v265, %v453
      %v720 = vsel %vm711, %v267, %v455
      %v721 = vsel %vm711, %v268, %v457
      %v722 = vsel %vm711, %v270, %v459
      %v723 = vsel %vm711, %v271, %v461
      %v724 = vsel %vm711, %v273, %v463
      %v725 = vsel %vm711, %v274, %v465
      %v726 = vsel %vm711, %v276, %v467
      %v727 = vsel %vm711, %v277, %v469
      %v728 = vsel %vm711, %v279, %v471
      %v729 = vsel %vm711, %v280, %v473
      %v730 = vsel %vm711, %v282, %v475
      %v731 = vsel %vm711, %v283, %v477
      %v732 = vsel %vm711, %v285, %v479
      %v733 = vsel %vm711, %v286, %v481
      %v734 = vsel %vm711, %v288, %v483
      %v735 = vsel %vm711, %v289, %v485
      %v736 = vsel %vm711, %v291, %v487
      %v737 = vsel %vm711, %v292, %v489
      %v738 = vsel %vm711, %v294, %v491
      %v739 = vsel %vm711, %v295, %v493
      %v740 = vsel %vm711, %v297, %v495
      %v741 = vsel %vm711, %v298, %v497
      %v742 = vsel %vm711, %v300, %v499
      %v743 = vsel %vm711, %v301, %v501
      %vm744 = vcmask 64512
      %v745 = vsel %vm744, %v712, %v616
      %v746 = vsel %vm744, %v713, %v618
      %v747 = vsel %vm744, %v714, %v620
      %v748 = vsel %vm744, %v715, %v622
      %v749 = vsel %vm744, %v716, %v624
      %v750 = vsel %vm744, %v717, %v626
      %v751 = vsel %vm744, %v718, %v628
      %v752 = vsel %vm744, %v719, %v630
      %v753 = vsel %vm744, %v720, %v632
      %v754 = vsel %vm744, %v721, %v634
      %v755 = vsel %vm744, %v722, %v636
      %v756 = vsel %vm744, %v723, %v638
      %v757 = vsel %vm744, %v724, %v640
      %v758 = vsel %vm744, %v725, %v642
      %v759 = vsel %vm744, %v726, %v644
      %v760 = vsel %vm744, %v727, %v646
      %v761 = vsel %vm744, %v728, %v648
      %v762 = vsel %vm744, %v729, %v650
      %v763 = vsel %vm744, %v730, %v652
      %v764 = vsel %vm744, %v731, %v654
      %v765 = vsel %vm744, %v732, %v656
      %v766 = vsel %vm744, %v733, %v658
      %v767 = vsel %vm744, %v734, %v660
      %v768 = vsel %vm744, %v735, %v662
      %v769 = vsel %vm744, %v736, %v664
      %v770 = vsel %vm744, %v737, %v666
      %v771 = vsel %vm744, %v738, %v668
      %v772 = vsel %vm744, %v739, %v670
      %v773 = vsel %vm744, %v740, %v672
      %v774 = vsel %vm744, %v741, %v674
      %v775 = vsel %vm744, %v742, %v676
      %v776 = vsel %vm744, %v743, %v678
      %vm777 = vcmask 97280
      %778 = vst.msk [vmem:[#allocation2] sm:$0xff] %vm777, %v745
      %779 = vst.msk [vmem:[#allocation2 + $0x8] sm:$0xff] %vm777, %v746
      %780 = vst.msk [vmem:[#allocation2 + $0x10] sm:$0xff] %vm777, %v747
      %781 = vst.msk [vmem:[#allocation2 + $0x18] sm:$0xff] %vm777, %v748
      %782 = vst.msk [vmem:[#allocation2 + $0x20] sm:$0xff] %vm777, %v749
      %783 = vst.msk [vmem:[#allocation2 + $0x28] sm:$0xff] %vm777, %v750
      %784 = vst.msk [vmem:[#allocation2 + $0x30] sm:$0xff] %vm777, %v751
      %785 = vst.msk [vmem:[#allocation2 + $0x38] sm:$0xff] %vm777, %v752
      %786 = vst.msk [vmem:[#allocation2 + $0x40] sm:$0xff] %vm777, %v753
      %787 = vst.msk [vmem:[#allocation2 + $0x48] sm:$0xff] %vm777, %v754
      %788 = vst.msk [vmem:[#allocation2 + $0x50] sm:$0xff] %vm777, %v755
      %789 = vst.msk [vmem:[#allocation2 + $0x58] sm:$0xff] %vm777, %v756
      %790 = vst.msk [vmem:[#allocation2 + $0x60] sm:$0xff] %vm777, %v757
      %791 = vst.msk [vmem:[#allocation2 + $0x68] sm:$0xff] %vm777, %v758
      %792 = vst.msk [vmem:[#allocation2 + $0x70] sm:$0xff] %vm777, %v759
      %793 = vst.msk [vmem:[#allocation2 + $0x78] sm:$0xff] %vm777, %v760
      %794 = vst.msk [vmem:[#allocation2 + $0x80] sm:$0xff] %vm777, %v761
      %795 = vst.msk [vmem:[#allocation2 + $0x88] sm:$0xff] %vm777, %v762
      %796 = vst.msk [vmem:[#allocation2 + $0x90] sm:$0xff] %vm777, %v763
      %797 = vst.msk [vmem:[#allocation2 + $0x98] sm:$0xff] %vm777, %v764
      %798 = vst.msk [vmem:[#allocation2 + $0xa0] sm:$0xff] %vm777, %v765
      %799 = vst.msk [vmem:[#allocation2 + $0xa8] sm:$0xff] %vm777, %v766
      %800 = vst.msk [vmem:[#allocation2 + $0xb0] sm:$0xff] %vm777, %v767
      %801 = vst.msk [vmem:[#allocation2 + $0xb8] sm:$0xff] %vm777, %v768
      %802 = vst.msk [vmem:[#allocation2 + $0xc0] sm:$0xff] %vm777, %v769
      %803 = vst.msk [vmem:[#allocation2 + $0xc8] sm:$0xff] %vm777, %v770
      %804 = vst.msk [vmem:[#allocation2 + $0xd0] sm:$0xff] %vm777, %v771
      %805 = vst.msk [vmem:[#allocation2 + $0xd8] sm:$0xff] %vm777, %v772
      %806 = vst.msk [vmem:[#allocation2 + $0xe0] sm:$0xff] %vm777, %v773
      %807 = vst.msk [vmem:[#allocation2 + $0xe8] sm:$0xff] %vm777, %v774
      %808 = vst.msk [vmem:[#allocation2 + $0xf0] sm:$0xff] %vm777, %v775
      %809 = vst.msk [vmem:[#allocation2 + $0xf8] sm:$0xff] %vm777, %v776
      %v813 = vrot.slane %v303, 1
      %v814 = vrot.slane %v304, 1
      %v815 = vsel %vm357, %v813, %v814
      %v816 = vrot.slane %v305, 1
      %v817 = vsel %vm357, %v814, %v816
      %818 = vrot.lane.b32.xlu0 %v815, 4
      %v819 = vpop.permute.xlu0 %818
      %820 = vrot.lane.b32.xlu0 %v817, 4
      %v821 = vpop.permute.xlu0 %820
      %v824 = vrot.slane %v303, 2
      %v825 = vrot.slane %v304, 2
      %v826 = vsel %vm534, %v824, %v825
      %v827 = vrot.slane %v305, 2
      %v828 = vsel %vm534, %v825, %v827
      %829 = vrot.lane.b32.xlu0 %v826, 8
      %v830 = vpop.permute.xlu0 %829
      %831 = vrot.lane.b32.xlu0 %v828, 8
      %v832 = vpop.permute.xlu0 %831
      %v835 = vsel %vm711, %v303, %v819
      %v836 = vsel %vm711, %v304, %v821
      %v837 = vsel %vm744, %v835, %v830
      %v838 = vsel %vm744, %v836, %v832
      %871 = vrot.lane.b32.xlu0 %v747, 12
      %v872 = vpop.permute.xlu0 %871
      %873 = vrot.lane.b32.xlu0 %v748, 12
      %v874 = vpop.permute.xlu0 %873
      %875 = vrot.lane.b32.xlu0 %v749, 12
      %v876 = vpop.permute.xlu0 %875
      %877 = vrot.lane.b32.xlu0 %v750, 12
      %v878 = vpop.permute.xlu0 %877
      %879 = vrot.lane.b32.xlu0 %v751, 12
      %v880 = vpop.permute.xlu0 %879
      %881 = vrot.lane.b32.xlu0 %v752, 12
      %v882 = vpop.permute.xlu0 %881
      %883 = vrot.lane.b32.xlu0 %v753, 12
      %v884 = vpop.permute.xlu0 %883
      %885 = vrot.lane.b32.xlu0 %v754, 12
      %v886 = vpop.permute.xlu0 %885
      %887 = vrot.lane.b32.xlu0 %v755, 12
      %v888 = vpop.permute.xlu0 %887
      %889 = vrot.lane.b32.xlu0 %v756, 12
      %v890 = vpop.permute.xlu0 %889
      %891 = vrot.lane.b32.xlu0 %v757, 12
      %v892 = vpop.permute.xlu0 %891
      %893 = vrot.lane.b32.xlu0 %v758, 12
      %v894 = vpop.permute.xlu0 %893
      %895 = vrot.lane.b32.xlu0 %v759, 12
      %v896 = vpop.permute.xlu0 %895
      %897 = vrot.lane.b32.xlu0 %v760, 12
      %v898 = vpop.permute.xlu0 %897
      %899 = vrot.lane.b32.xlu0 %v761, 12
      %v900 = vpop.permute.xlu0 %899
      %901 = vrot.lane.b32.xlu0 %v762, 12
      %v902 = vpop.permute.xlu0 %901
      %903 = vrot.lane.b32.xlu0 %v763, 12
      %v904 = vpop.permute.xlu0 %903
      %905 = vrot.lane.b32.xlu0 %v764, 12
      %v906 = vpop.permute.xlu0 %905
      %907 = vrot.lane.b32.xlu0 %v765, 12
      %v908 = vpop.permute.xlu0 %907
      %909 = vrot.lane.b32.xlu0 %v766, 12
      %v910 = vpop.permute.xlu0 %909
      %911 = vrot.lane.b32.xlu0 %v767, 12
      %v912 = vpop.permute.xlu0 %911
      %913 = vrot.lane.b32.xlu0 %v768, 12
      %v914 = vpop.permute.xlu0 %913
      %915 = vrot.lane.b32.xlu0 %v769, 12
      %v916 = vpop.permute.xlu0 %915
      %917 = vrot.lane.b32.xlu0 %v770, 12
      %v918 = vpop.permute.xlu0 %917
      %919 = vrot.lane.b32.xlu0 %v771, 12
      %v920 = vpop.permute.xlu0 %919
      %921 = vrot.lane.b32.xlu0 %v772, 12
      %v922 = vpop.permute.xlu0 %921
      %923 = vrot.lane.b32.xlu0 %v773, 12
      %v924 = vpop.permute.xlu0 %923
      %925 = vrot.lane.b32.xlu0 %v774, 12
      %v926 = vpop.permute.xlu0 %925
      %927 = vrot.lane.b32.xlu0 %v775, 12
      %v928 = vpop.permute.xlu0 %927
      %929 = vrot.lane.b32.xlu0 %v776, 12
      %v930 = vpop.permute.xlu0 %929
      %931 = vrot.lane.b32.xlu0 %v837, 12
      %v932 = vpop.permute.xlu0 %931
      %933 = vrot.lane.b32.xlu0 %v838, 12
      %v934 = vpop.permute.xlu0 %933
      %vm967 = vcmask 195680
      %968 = vst.msk [vmem:[#allocation2] sm:$0xff] %vm967, %v872
      %969 = vst.msk [vmem:[#allocation2 + $0x8] sm:$0xff] %vm967, %v874
      %970 = vst.msk [vmem:[#allocation2 + $0x10] sm:$0xff] %vm967, %v876
      %971 = vst.msk [vmem:[#allocation2 + $0x18] sm:$0xff] %vm967, %v878
      %972 = vst.msk [vmem:[#allocation2 + $0x20] sm:$0xff] %vm967, %v880
      %973 = vst.msk [vmem:[#allocation2 + $0x28] sm:$0xff] %vm967, %v882
      %974 = vst.msk [vmem:[#allocation2 + $0x30] sm:$0xff] %vm967, %v884
      %975 = vst.msk [vmem:[#allocation2 + $0x38] sm:$0xff] %vm967, %v886
      %976 = vst.msk [vmem:[#allocation2 + $0x40] sm:$0xff] %vm967, %v888
      %977 = vst.msk [vmem:[#allocation2 + $0x48] sm:$0xff] %vm967, %v890
      %978 = vst.msk [vmem:[#allocation2 + $0x50] sm:$0xff] %vm967, %v892
      %979 = vst.msk [vmem:[#allocation2 + $0x58] sm:$0xff] %vm967, %v894
      %980 = vst.msk [vmem:[#allocation2 + $0x60] sm:$0xff] %vm967, %v896
      %981 = vst.msk [vmem:[#allocation2 + $0x68] sm:$0xff] %vm967, %v898
      %982 = vst.msk [vmem:[#allocation2 + $0x70] sm:$0xff] %vm967, %v900
      %983 = vst.msk [vmem:[#allocation2 + $0x78] sm:$0xff] %vm967, %v902
      %984 = vst.msk [vmem:[#allocation2 + $0x80] sm:$0xff] %vm967, %v904
      %985 = vst.msk [vmem:[#allocation2 + $0x88] sm:$0xff] %vm967, %v906
      %986 = vst.msk [vmem:[#allocation2 + $0x90] sm:$0xff] %vm967, %v908
      %987 = vst.msk [vmem:[#allocation2 + $0x98] sm:$0xff] %vm967, %v910
      %988 = vst.msk [vmem:[#allocation2 + $0xa0] sm:$0xff] %vm967, %v912
      %989 = vst.msk [vmem:[#allocation2 + $0xa8] sm:$0xff] %vm967, %v914
      %990 = vst.msk [vmem:[#allocation2 + $0xb0] sm:$0xff] %vm967, %v916
      %991 = vst.msk [vmem:[#allocation2 + $0xb8] sm:$0xff] %vm967, %v918
      %992 = vst.msk [vmem:[#allocation2 + $0xc0] sm:$0xff] %vm967, %v920
      %993 = vst.msk [vmem:[#allocation2 + $0xc8] sm:$0xff] %vm967, %v922
      %994 = vst.msk [vmem:[#allocation2 + $0xd0] sm:$0xff] %vm967, %v924
      %995 = vst.msk [vmem:[#allocation2 + $0xd8] sm:$0xff] %vm967, %v926
      %996 = vst.msk [vmem:[#allocation2 + $0xe0] sm:$0xff] %vm967, %v928
      %997 = vst.msk [vmem:[#allocation2 + $0xe8] sm:$0xff] %vm967, %v930
      %998 = vst.msk [vmem:[#allocation2 + $0xf0] sm:$0xff] %vm967, %v932
      %999 = vst.msk [vmem:[#allocation2 + $0xf8] sm:$0xff] %vm967, %v934
      %v1003 = vrot.slane %v306, 1
      %v1004 = vrot.slane %v307, 1
      %v1005 = vsel %vm357, %v1003, %v1004
      %v1006 = vrot.slane %v308, 1
      %v1007 = vsel %vm357, %v1004, %v1006
      %1008 = vrot.lane.b32.xlu0 %v1005, 4
      %v1009 = vpop.permute.xlu0 %1008
      %1010 = vrot.lane.b32.xlu0 %v1007, 4
      %v1011 = vpop.permute.xlu0 %1010
      %v1014 = vrot.slane %v306, 2
      %v1015 = vrot.slane %v307, 2
      %v1016 = vsel %vm534, %v1014, %v1015
      %v1017 = vrot.slane %v308, 2
      %v1018 = vsel %vm534, %v1015, %v1017
      %1019 = vrot.lane.b32.xlu0 %v1016, 8
      %v1020 = vpop.permute.xlu0 %1019
      %1021 = vrot.lane.b32.xlu0 %v1018, 8
      %v1022 = vpop.permute.xlu0 %1021
      %v1025 = vsel %vm711, %v306, %v1009
      %v1026 = vsel %vm711, %v307, %v1011
      %v1027 = vsel %vm744, %v1025, %v1020
      %v1028 = vsel %vm744, %v1026, %v1022
      %1031 = vrot.lane.b32.xlu0 %v749, 24
      %v1032 = vpop.permute.xlu0 %1031
      %1033 = vrot.lane.b32.xlu0 %v750, 24
      %v1034 = vpop.permute.xlu0 %1033
      %1035 = vrot.lane.b32.xlu0 %v751, 24
      %v1036 = vpop.permute.xlu0 %1035
      %1037 = vrot.lane.b32.xlu0 %v752, 24
      %v1038 = vpop.permute.xlu0 %1037
      %1039 = vrot.lane.b32.xlu0 %v753, 24
      %v1040 = vpop.permute.xlu0 %1039
      %1041 = vrot.lane.b32.xlu0 %v754, 24
      %v1042 = vpop.permute.xlu0 %1041
      %1043 = vrot.lane.b32.xlu0 %v755, 24
      %v1044 = vpop.permute.xlu0 %1043
      %1045 = vrot.lane.b32.xlu0 %v756, 24
      %v1046 = vpop.permute.xlu0 %1045
      %1047 = vrot.lane.b32.xlu0 %v757, 24
      %v1048 = vpop.permute.xlu0 %1047
      %1049 = vrot.lane.b32.xlu0 %v758, 24
      %v1050 = vpop.permute.xlu0 %1049
      %1051 = vrot.lane.b32.xlu0 %v759, 24
      %v1052 = vpop.permute.xlu0 %1051
      %1053 = vrot.lane.b32.xlu0 %v760, 24
      %v1054 = vpop.permute.xlu0 %1053
      %1055 = vrot.lane.b32.xlu0 %v761, 24
      %v1056 = vpop.permute.xlu0 %1055
      %1057 = vrot.lane.b32.xlu0 %v762, 24
      %v1058 = vpop.permute.xlu0 %1057
      %1059 = vrot.lane.b32.xlu0 %v763, 24
      %v1060 = vpop.permute.xlu0 %1059
      %1061 = vrot.lane.b32.xlu0 %v764, 24
      %v1062 = vpop.permute.xlu0 %1061
      %1063 = vrot.lane.b32.xlu0 %v765, 24
      %v1064 = vpop.permute.xlu0 %1063
      %1065 = vrot.lane.b32.xlu0 %v766, 24
      %v1066 = vpop.permute.xlu0 %1065
      %1067 = vrot.lane.b32.xlu0 %v767, 24
      %v1068 = vpop.permute.xlu0 %1067
      %1069 = vrot.lane.b32.xlu0 %v768, 24
      %v1070 = vpop.permute.xlu0 %1069
      %1071 = vrot.lane.b32.xlu0 %v769, 24
      %v1072 = vpop.permute.xlu0 %1071
      %1073 = vrot.lane.b32.xlu0 %v770, 24
      %v1074 = vpop.permute.xlu0 %1073
      %1075 = vrot.lane.b32.xlu0 %v771, 24
      %v1076 = vpop.permute.xlu0 %1075
      %1077 = vrot.lane.b32.xlu0 %v772, 24
      %v1078 = vpop.permute.xlu0 %1077
      %1079 = vrot.lane.b32.xlu0 %v773, 24
      %v1080 = vpop.permute.xlu0 %1079
      %1081 = vrot.lane.b32.xlu0 %v774, 24
      %v1082 = vpop.permute.xlu0 %1081
      %1083 = vrot.lane.b32.xlu0 %v775, 24
      %v1084 = vpop.permute.xlu0 %1083
      %1085 = vrot.lane.b32.xlu0 %v776, 24
      %v1086 = vpop.permute.xlu0 %1085
      %1087 = vrot.lane.b32.xlu0 %v837, 24
      %v1088 = vpop.permute.xlu0 %1087
      %1089 = vrot.lane.b32.xlu0 %v838, 24
      %v1090 = vpop.permute.xlu0 %1089
      %1091 = vrot.lane.b32.xlu0 %v1027, 24
      %v1092 = vpop.permute.xlu0 %1091
      %1093 = vrot.lane.b32.xlu0 %v1028, 24
      %v1094 = vpop.permute.xlu0 %1093
      %vm1127 = vcmask 294080
      %1128 = vst.msk [vmem:[#allocation2] sm:$0xff] %vm1127, %v1032
      %1129 = vst.msk [vmem:[#allocation2 + $0x8] sm:$0xff] %vm1127, %v1034
      %1130 = vst.msk [vmem:[#allocation2 + $0x10] sm:$0xff] %vm1127, %v1036
      %1131 = vst.msk [vmem:[#allocation2 + $0x18] sm:$0xff] %vm1127, %v1038
      %1132 = vst.msk [vmem:[#allocation2 + $0x20] sm:$0xff] %vm1127, %v1040
      %1133 = vst.msk [vmem:[#allocation2 + $0x28] sm:$0xff] %vm1127, %v1042
      %1134 = vst.msk [vmem:[#allocation2 + $0x30] sm:$0xff] %vm1127, %v1044
      %1135 = vst.msk [vmem:[#allocation2 + $0x38] sm:$0xff] %vm1127, %v1046
      %1136 = vst.msk [vmem:[#allocation2 + $0x40] sm:$0xff] %vm1127, %v1048
      %1137 = vst.msk [vmem:[#allocation2 + $0x48] sm:$0xff] %vm1127, %v1050
      %1138 = vst.msk [vmem:[#allocation2 + $0x50] sm:$0xff] %vm1127, %v1052
      %1139 = vst.msk [vmem:[#allocation2 + $0x58] sm:$0xff] %vm1127, %v1054
      %1140 = vst.msk [vmem:[#allocation2 + $0x60] sm:$0xff] %vm1127, %v1056
      %1141 = vst.msk [vmem:[#allocation2 + $0x68] sm:$0xff] %vm1127, %v1058
      %1142 = vst.msk [vmem:[#allocation2 + $0x70] sm:$0xff] %vm1127, %v1060
      %1143 = vst.msk [vmem:[#allocation2 + $0x78] sm:$0xff] %vm1127, %v1062
      %1144 = vst.msk [vmem:[#allocation2 + $0x80] sm:$0xff] %vm1127, %v1064
      %1145 = vst.msk [vmem:[#allocation2 + $0x88] sm:$0xff] %vm1127, %v1066
      %1146 = vst.msk [vmem:[#allocation2 + $0x90] sm:$0xff] %vm1127, %v1068
      %1147 = vst.msk [vmem:[#allocation2 + $0x98] sm:$0xff] %vm1127, %v1070
      %1148 = vst.msk [vmem:[#allocation2 + $0xa0] sm:$0xff] %vm1127, %v1072
      %1149 = vst.msk [vmem:[#allocation2 + $0xa8] sm:$0xff] %vm1127, %v1074
      %1150 = vst.msk [vmem:[#allocation2 + $0xb0] sm:$0xff] %vm1127, %v1076
      %1151 = vst.msk [vmem:[#allocation2 + $0xb8] sm:$0xff] %vm1127, %v1078
      %1152 = vst.msk [vmem:[#allocation2 + $0xc0] sm:$0xff] %vm1127, %v1080
      %1153 = vst.msk [vmem:[#allocation2 + $0xc8] sm:$0xff] %vm1127, %v1082
      %1154 = vst.msk [vmem:[#allocation2 + $0xd0] sm:$0xff] %vm1127, %v1084
      %1155 = vst.msk [vmem:[#allocation2 + $0xd8] sm:$0xff] %vm1127, %v1086
      %1156 = vst.msk [vmem:[#allocation2 + $0xe0] sm:$0xff] %vm1127, %v1088
      %1157 = vst.msk [vmem:[#allocation2 + $0xe8] sm:$0xff] %vm1127, %v1090
      %1158 = vst.msk [vmem:[#allocation2 + $0xf0] sm:$0xff] %vm1127, %v1092
      %1159 = vst.msk [vmem:[#allocation2 + $0xf8] sm:$0xff] %vm1127, %v1094
      %v1160 = vld [vmem:[%s243] sm:$0xff]
      %v1161 = vld [vmem:[%s243 + $0x8] sm:$0xff]
      %v1162 = vld [vmem:[%s243 + $0x10] sm:$0x3]
      %v1163 = vld [vmem:[%s243 + $0x18] sm:$0xff]
      %v1164 = vld [vmem:[%s243 + $0x20] sm:$0xff]
      %v1165 = vld [vmem:[%s243 + $0x28] sm:$0x3]
      %v1166 = vld [vmem:[%s243 + $0x30] sm:$0xff]
      %v1167 = vld [vmem:[%s243 + $0x38] sm:$0xff]
      %v1168 = vld [vmem:[%s243 + $0x40] sm:$0x3]
      %v1169 = vld [vmem:[%s243 + $0x48] sm:$0xff]
      %v1170 = vld [vmem:[%s243 + $0x50] sm:$0xff]
      %v1171 = vld [vmem:[%s243 + $0x58] sm:$0x3]
      %v1172 = vld [vmem:[%s243 + $0x60] sm:$0xff]
      %v1173 = vld [vmem:[%s243 + $0x68] sm:$0xff]
      %v1174 = vld [vmem:[%s243 + $0x70] sm:$0x3]
      %v1175 = vld [vmem:[%s243 + $0x78] sm:$0xff]
      %v1176 = vld [vmem:[%s243 + $0x80] sm:$0xff]
      %v1177 = vld [vmem:[%s243 + $0x88] sm:$0x3]
      %v1178 = vld [vmem:[%s243 + $0x90] sm:$0xff]
      %v1179 = vld [vmem:[%s243 + $0x98] sm:$0xff]
      %v1180 = vld [vmem:[%s243 + $0xa0] sm:$0x3]
      %v1181 = vld [vmem:[%s243 + $0xa8] sm:$0xff]
      %v1182 = vld [vmem:[%s243 + $0xb0] sm:$0xff]
      %v1183 = vld [vmem:[%s243 + $0xb8] sm:$0x3]
      %v1184 = vld [vmem:[%s243 + $0xc0] sm:$0xff]
      %v1185 = vld [vmem:[%s243 + $0xc8] sm:$0xff]
      %v1186 = vld [vmem:[%s243 + $0xd0] sm:$0x3]
      %v1187 = vld [vmem:[%s243 + $0xd8] sm:$0xff]
      %v1188 = vld [vmem:[%s243 + $0xe0] sm:$0xff]
      %v1189 = vld [vmem:[%s243 + $0xe8] sm:$0x3]
      %v1190 = vld [vmem:[%s243 + $0xf0] sm:$0xff]
      %v1191 = vld [vmem:[%s243 + $0xf8] sm:$0xff]
      %v1192 = vld [vmem:[%s243 + $0x100] sm:$0x3]
      %v1193 = vld [vmem:[%s243 + $0x108] sm:$0xff]
      %v1194 = vld [vmem:[%s243 + $0x110] sm:$0xff]
      %v1195 = vld [vmem:[%s243 + $0x118] sm:$0x3]
      %v1196 = vld [vmem:[%s243 + $0x120] sm:$0xff]
      %v1197 = vld [vmem:[%s243 + $0x128] sm:$0xff]
      %v1198 = vld [vmem:[%s243 + $0x130] sm:$0x3]
      %v1199 = vld [vmem:[%s243 + $0x138] sm:$0xff]
      %v1200 = vld [vmem:[%s243 + $0x140] sm:$0xff]
      %v1201 = vld [vmem:[%s243 + $0x148] sm:$0x3]
      %v1202 = vld [vmem:[%s243 + $0x150] sm:$0xff]
      %v1203 = vld [vmem:[%s243 + $0x158] sm:$0xff]
      %v1204 = vld [vmem:[%s243 + $0x160] sm:$0x3]
      %v1205 = vld [vmem:[%s243 + $0x168] sm:$0xff]
      %v1206 = vld [vmem:[%s243 + $0x170] sm:$0xff]
      %v1207 = vld [vmem:[%s243 + $0x178] sm:$0x3]
      %v1208 = vld [vmem:[%s243 + $0x180] sm:$0xff]
      %v1209 = vld [vmem:[%s243 + $0x188] sm:$0xff]
      %v1210 = vld [vmem:[%s243 + $0x190] sm:$0x3]
      %v1211 = vld [vmem:[%s243 + $0x198] sm:$0xff]
      %v1212 = vld [vmem:[%s243 + $0x1a0] sm:$0xff]
      %v1213 = vld [vmem:[%s243 + $0x1a8] sm:$0x3]
      %v1262 = vrot.slane %v1160, 1
      %v1263 = vrot.slane %v1161, 1
      %v1264 = vsel %vm357, %v1262, %v1263
      %v1265 = vrot.slane %v1162, 1
      %v1266 = vsel %vm357, %v1263, %v1265
      %v1267 = vrot.slane %v1163, 1
      %v1268 = vrot.slane %v1164, 1
      %v1269 = vsel %vm357, %v1267, %v1268
      %v1270 = vrot.slane %v1165, 1
      %v1271 = vsel %vm357, %v1268, %v1270
      %v1272 = vrot.slane %v1166, 1
      %v1273 = vrot.slane %v1167, 1
      %v1274 = vsel %vm357, %v1272, %v1273
      %v1275 = vrot.slane %v1168, 1
      %v1276 = vsel %vm357, %v1273, %v1275
      %v1277 = vrot.slane %v1169, 1
      %v1278 = vrot.slane %v1170, 1
      %v1279 = vsel %vm357, %v1277, %v1278
      %v1280 = vrot.slane %v1171, 1
      %v1281 = vsel %vm357, %v1278, %v1280
      %v1282 = vrot.slane %v1172, 1
      %v1283 = vrot.slane %v1173, 1
      %v1284 = vsel %vm357, %v1282, %v1283
      %v1285 = vrot.slane %v1174, 1
      %v1286 = vsel %vm357, %v1283, %v1285
      %v1287 = vrot.slane %v1175, 1
      %v1288 = vrot.slane %v1176, 1
      %v1289 = vsel %vm357, %v1287, %v1288
      %v1290 = vrot.slane %v1177, 1
      %v1291 = vsel %vm357, %v1288, %v1290
      %v1292 = vrot.slane %v1178, 1
      %v1293 = vrot.slane %v1179, 1
      %v1294 = vsel %vm357, %v1292, %v1293
      %v1295 = vrot.slane %v1180, 1
      %v1296 = vsel %vm357, %v1293, %v1295
      %v1297 = vrot.slane %v1181, 1
      %v1298 = vrot.slane %v1182, 1
      %v1299 = vsel %vm357, %v1297, %v1298
      %v1300 = vrot.slane %v1183, 1
      %v1301 = vsel %vm357, %v1298, %v1300
      %v1302 = vrot.slane %v1184, 1
      %v1303 = vrot.slane %v1185, 1
      %v1304 = vsel %vm357, %v1302, %v1303
      %v1305 = vrot.slane %v1186, 1
      %v1306 = vsel %vm357, %v1303, %v1305
      %v1307 = vrot.slane %v1187, 1
      %v1308 = vrot.slane %v1188, 1
      %v1309 = vsel %vm357, %v1307, %v1308
      %v1310 = vrot.slane %v1189, 1
      %v1311 = vsel %vm357, %v1308, %v1310
      %v1312 = vrot.slane %v1190, 1
      %v1313 = vrot.slane %v1191, 1
      %v1314 = vsel %vm357, %v1312, %v1313
      %v1315 = vrot.slane %v1192, 1
      %v1316 = vsel %vm357, %v1313, %v1315
      %v1317 = vrot.slane %v1193, 1
      %v1318 = vrot.slane %v1194, 1
      %v1319 = vsel %vm357, %v1317, %v1318
      %v1320 = vrot.slane %v1195, 1
      %v1321 = vsel %vm357, %v1318, %v1320
      %v1322 = vrot.slane %v1196, 1
      %v1323 = vrot.slane %v1197, 1
      %v1324 = vsel %vm357, %v1322, %v1323
      %v1325 = vrot.slane %v1198, 1
      %v1326 = vsel %vm357, %v1323, %v1325
      %v1327 = vrot.slane %v1199, 1
      %v1328 = vrot.slane %v1200, 1
      %v1329 = vsel %vm357, %v1327, %v1328
      %v1330 = vrot.slane %v1201, 1
      %v1331 = vsel %vm357, %v1328, %v1330
      %v1332 = vrot.slane %v1202, 1
      %v1333 = vrot.slane %v1203, 1
      %v1334 = vsel %vm357, %v1332, %v1333
      %v1335 = vrot.slane %v1204, 1
      %v1336 = vsel %vm357, %v1333, %v1335
      %v1337 = vrot.slane %v1205, 1
      %v1338 = vrot.slane %v1206, 1
      %v1339 = vsel %vm357, %v1337, %v1338
      %v1340 = vrot.slane %v1207, 1
      %v1341 = vsel %vm357, %v1338, %v1340
      %1342 = vrot.lane.b32.xlu0 %v1264, 4
      %v1343 = vpop.permute.xlu0 %1342
      %1344 = vrot.lane.b32.xlu0 %v1266, 4
      %v1345 = vpop.permute.xlu0 %1344
      %1346 = vrot.lane.b32.xlu0 %v1269, 4
      %v1347 = vpop.permute.xlu0 %1346
      %1348 = vrot.lane.b32.xlu0 %v1271, 4
      %v1349 = vpop.permute.xlu0 %1348
      %1350 = vrot.lane.b32.xlu0 %v1274, 4
      %v1351 = vpop.permute.xlu0 %1350
      %1352 = vrot.lane.b32.xlu0 %v1276, 4
      %v1353 = vpop.permute.xlu0 %1352
      %1354 = vrot.lane.b32.xlu0 %v1279, 4
      %v1355 = vpop.permute.xlu0 %1354
      %1356 = vrot.lane.b32.xlu0 %v1281, 4
      %v1357 = vpop.permute.xlu0 %1356
      %1358 = vrot.lane.b32.xlu0 %v1284, 4
      %v1359 = vpop.permute.xlu0 %1358
      %1360 = vrot.lane.b32.xlu0 %v1286, 4
      %v1361 = vpop.permute.xlu0 %1360
      %1362 = vrot.lane.b32.xlu0 %v1289, 4
      %v1363 = vpop.permute.xlu0 %1362
      %1364 = vrot.lane.b32.xlu0 %v1291, 4
      %v1365 = vpop.permute.xlu0 %1364
      %1366 = vrot.lane.b32.xlu0 %v1294, 4
      %v1367 = vpop.permute.xlu0 %1366
      %1368 = vrot.lane.b32.xlu0 %v1296, 4
      %v1369 = vpop.permute.xlu0 %1368
      %1370 = vrot.lane.b32.xlu0 %v1299, 4
      %v1371 = vpop.permute.xlu0 %1370
      %1372 = vrot.lane.b32.xlu0 %v1301, 4
      %v1373 = vpop.permute.xlu0 %1372
      %1374 = vrot.lane.b32.xlu0 %v1304, 4
      %v1375 = vpop.permute.xlu0 %1374
      %1376 = vrot.lane.b32.xlu0 %v1306, 4
      %v1377 = vpop.permute.xlu0 %1376
      %1378 = vrot.lane.b32.xlu0 %v1309, 4
      %v1379 = vpop.permute.xlu0 %1378
      %1380 = vrot.lane.b32.xlu0 %v1311, 4
      %v1381 = vpop.permute.xlu0 %1380
      %1382 = vrot.lane.b32.xlu0 %v1314, 4
      %v1383 = vpop.permute.xlu0 %1382
      %1384 = vrot.lane.b32.xlu0 %v1316, 4
      %v1385 = vpop.permute.xlu0 %1384
      %1386 = vrot.lane.b32.xlu0 %v1319, 4
      %v1387 = vpop.permute.xlu0 %1386
      %1388 = vrot.lane.b32.xlu0 %v1321, 4
      %v1389 = vpop.permute.xlu0 %1388
      %1390 = vrot.lane.b32.xlu0 %v1324, 4
      %v1391 = vpop.permute.xlu0 %1390
      %1392 = vrot.lane.b32.xlu0 %v1326, 4
      %v1393 = vpop.permute.xlu0 %1392
      %1394 = vrot.lane.b32.xlu0 %v1329, 4
      %v1395 = vpop.permute.xlu0 %1394
      %1396 = vrot.lane.b32.xlu0 %v1331, 4
      %v1397 = vpop.permute.xlu0 %1396
      %1398 = vrot.lane.b32.xlu0 %v1334, 4
      %v1399 = vpop.permute.xlu0 %1398
      %1400 = vrot.lane.b32.xlu0 %v1336, 4
      %v1401 = vpop.permute.xlu0 %1400
      %1402 = vrot.lane.b32.xlu0 %v1339, 4
      %v1403 = vpop.permute.xlu0 %1402
      %1404 = vrot.lane.b32.xlu0 %v1341, 4
      %v1405 = vpop.permute.xlu0 %1404
      %v1438 = vrot.slane %v1160, 2
      %v1439 = vrot.slane %v1161, 2
      %v1440 = vsel %vm534, %v1438, %v1439
      %v1441 = vrot.slane %v1162, 2
      %v1442 = vsel %vm534, %v1439, %v1441
      %v1443 = vrot.slane %v1163, 2
      %v1444 = vrot.slane %v1164, 2
      %v1445 = vsel %vm534, %v1443, %v1444
      %v1446 = vrot.slane %v1165, 2
      %v1447 = vsel %vm534, %v1444, %v1446
      %v1448 = vrot.slane %v1166, 2
      %v1449 = vrot.slane %v1167, 2
      %v1450 = vsel %vm534, %v1448, %v1449
      %v1451 = vrot.slane %v1168, 2
      %v1452 = vsel %vm534, %v1449, %v1451
      %v1453 = vrot.slane %v1169, 2
      %v1454 = vrot.slane %v1170, 2
      %v1455 = vsel %vm534, %v1453, %v1454
      %v1456 = vrot.slane %v1171, 2
      %v1457 = vsel %vm534, %v1454, %v1456
      %v1458 = vrot.slane %v1172, 2
      %v1459 = vrot.slane %v1173, 2
      %v1460 = vsel %vm534, %v1458, %v1459
      %v1461 = vrot.slane %v1174, 2
      %v1462 = vsel %vm534, %v1459, %v1461
      %v1463 = vrot.slane %v1175, 2
      %v1464 = vrot.slane %v1176, 2
      %v1465 = vsel %vm534, %v1463, %v1464
      %v1466 = vrot.slane %v1177, 2
      %v1467 = vsel %vm534, %v1464, %v1466
      %v1468 = vrot.slane %v1178, 2
      %v1469 = vrot.slane %v1179, 2
      %v1470 = vsel %vm534, %v1468, %v1469
      %v1471 = vrot.slane %v1180, 2
      %v1472 = vsel %vm534, %v1469, %v1471
      %v1473 = vrot.slane %v1181, 2
      %v1474 = vrot.slane %v1182, 2
      %v1475 = vsel %vm534, %v1473, %v1474
      %v1476 = vrot.slane %v1183, 2
      %v1477 = vsel %vm534, %v1474, %v1476
      %v1478 = vrot.slane %v1184, 2
      %v1479 = vrot.slane %v1185, 2
      %v1480 = vsel %vm534, %v1478, %v1479
      %v1481 = vrot.slane %v1186, 2
      %v1482 = vsel %vm534, %v1479, %v1481
      %v1483 = vrot.slane %v1187, 2
      %v1484 = vrot.slane %v1188, 2
      %v1485 = vsel %vm534, %v1483, %v1484
      %v1486 = vrot.slane %v1189, 2
      %v1487 = vsel %vm534, %v1484, %v1486
      %v1488 = vrot.slane %v1190, 2
      %v1489 = vrot.slane %v1191, 2
      %v1490 = vsel %vm534, %v1488, %v1489
      %v1491 = vrot.slane %v1192, 2
      %v1492 = vsel %vm534, %v1489, %v1491
      %v1493 = vrot.slane %v1193, 2
      %v1494 = vrot.slane %v1194, 2
      %v1495 = vsel %vm534, %v1493, %v1494
      %v1496 = vrot.slane %v1195, 2
      %v1497 = vsel %vm534, %v1494, %v1496
      %v1498 = vrot.slane %v1196, 2
      %v1499 = vrot.slane %v1197, 2
      %v1500 = vsel %vm534, %v1498, %v1499
      %v1501 = vrot.slane %v1198, 2
      %v1502 = vsel %vm534, %v1499, %v1501
      %v1503 = vrot.slane %v1199, 2
      %v1504 = vrot.slane %v1200, 2
      %v1505 = vsel %vm534, %v1503, %v1504
      %v1506 = vrot.slane %v1201, 2
      %v1507 = vsel %vm534, %v1504, %v1506
      %v1508 = vrot.slane %v1202, 2
      %v1509 = vrot.slane %v1203, 2
      %v1510 = vsel %vm534, %v1508, %v1509
      %v1511 = vrot.slane %v1204, 2
      %v1512 = vsel %vm534, %v1509, %v1511
      %v1513 = vrot.slane %v1205, 2
      %v1514 = vrot.slane %v1206, 2
      %v1515 = vsel %vm534, %v1513, %v1514
      %v1516 = vrot.slane %v1207, 2
      %v1517 = vsel %vm534, %v1514, %v1516
      %1518 = vrot.lane.b32.xlu0 %v1440, 8
      %v1519 = vpop.permute.xlu0 %1518
      %1520 = vrot.lane.b32.xlu0 %v1442, 8
      %v1521 = vpop.permute.xlu0 %1520
      %1522 = vrot.lane.b32.xlu0 %v1445, 8
      %v1523 = vpop.permute.xlu0 %1522
      %1524 = vrot.lane.b32.xlu0 %v1447, 8
      %v1525 = vpop.permute.xlu0 %1524
      %1526 = vrot.lane.b32.xlu0 %v1450, 8
      %v1527 = vpop.permute.xlu0 %1526
      %1528 = vrot.lane.b32.xlu0 %v1452, 8
      %v1529 = vpop.permute.xlu0 %1528
      %1530 = vrot.lane.b32.xlu0 %v1455, 8
      %v1531 = vpop.permute.xlu0 %1530
      %1532 = vrot.lane.b32.xlu0 %v1457, 8
      %v1533 = vpop.permute.xlu0 %1532
      %1534 = vrot.lane.b32.xlu0 %v1460, 8
      %v1535 = vpop.permute.xlu0 %1534
      %1536 = vrot.lane.b32.xlu0 %v1462, 8
      %v1537 = vpop.permute.xlu0 %1536
      %1538 = vrot.lane.b32.xlu0 %v1465, 8
      %v1539 = vpop.permute.xlu0 %1538
      %1540 = vrot.lane.b32.xlu0 %v1467, 8
      %v1541 = vpop.permute.xlu0 %1540
      %1542 = vrot.lane.b32.xlu0 %v1470, 8
      %v1543 = vpop.permute.xlu0 %1542
      %1544 = vrot.lane.b32.xlu0 %v1472, 8
      %v1545 = vpop.permute.xlu0 %1544
      %1546 = vrot.lane.b32.xlu0 %v1475, 8
      %v1547 = vpop.permute.xlu0 %1546
      %1548 = vrot.lane.b32.xlu0 %v1477, 8
      %v1549 = vpop.permute.xlu0 %1548
      %1550 = vrot.lane.b32.xlu0 %v1480, 8
      %v1551 = vpop.permute.xlu0 %1550
      %1552 = vrot.lane.b32.xlu0 %v1482, 8
      %v1553 = vpop.permute.xlu0 %1552
      %1554 = vrot.lane.b32.xlu0 %v1485, 8
      %v1555 = vpop.permute.xlu0 %1554
      %1556 = vrot.lane.b32.xlu0 %v1487, 8
      %v1557 = vpop.permute.xlu0 %1556
      %1558 = vrot.lane.b32.xlu0 %v1490, 8
      %v1559 = vpop.permute.xlu0 %1558
      %1560 = vrot.lane.b32.xlu0 %v1492, 8
      %v1561 = vpop.permute.xlu0 %1560
      %1562 = vrot.lane.b32.xlu0 %v1495, 8
      %v1563 = vpop.permute.xlu0 %1562
      %1564 = vrot.lane.b32.xlu0 %v1497, 8
      %v1565 = vpop.permute.xlu0 %1564
      %1566 = vrot.lane.b32.xlu0 %v1500, 8
      %v1567 = vpop.permute.xlu0 %1566
      %1568 = vrot.lane.b32.xlu0 %v1502, 8
      %v1569 = vpop.permute.xlu0 %1568
      %1570 = vrot.lane.b32.xlu0 %v1505, 8
      %v1571 = vpop.permute.xlu0 %1570
      %1572 = vrot.lane.b32.xlu0 %v1507, 8
      %v1573 = vpop.permute.xlu0 %1572
      %1574 = vrot.lane.b32.xlu0 %v1510, 8
      %v1575 = vpop.permute.xlu0 %1574
      %1576 = vrot.lane.b32.xlu0 %v1512, 8
      %v1577 = vpop.permute.xlu0 %1576
      %1578 = vrot.lane.b32.xlu0 %v1515, 8
      %v1579 = vpop.permute.xlu0 %1578
      %1580 = vrot.lane.b32.xlu0 %v1517, 8
      %v1581 = vpop.permute.xlu0 %1580
      %v1614 = vsel %vm711, %v1160, %v1343
      %v1615 = vsel %vm711, %v1161, %v1345
      %v1616 = vsel %vm711, %v1163, %v1347
      %v1617 = vsel %vm711, %v1164, %v1349
      %v1618 = vsel %vm711, %v1166, %v1351
      %v1619 = vsel %vm711, %v1167, %v1353
      %v1620 = vsel %vm711, %v1169, %v1355
      %v1621 = vsel %vm711, %v1170, %v1357
      %v1622 = vsel %vm711, %v1172, %v1359
      %v1623 = vsel %vm711, %v1173, %v1361
      %v1624 = vsel %vm711, %v1175, %v1363
      %v1625 = vsel %vm711, %v1176, %v1365
      %v1626 = vsel %vm711, %v1178, %v1367
      %v1627 = vsel %vm711, %v1179, %v1369
      %v1628 = vsel %vm711, %v1181, %v1371
      %v1629 = vsel %vm711, %v1182, %v1373
      %v1630 = vsel %vm711, %v1184, %v1375
      %v1631 = vsel %vm711, %v1185, %v1377
      %v1632 = vsel %vm711, %v1187, %v1379
      %v1633 = vsel %vm711, %v1188, %v1381
      %v1634 = vsel %vm711, %v1190, %v1383
      %v1635 = vsel %vm711, %v1191, %v1385
      %v1636 = vsel %vm711, %v1193, %v1387
      %v1637 = vsel %vm711, %v1194, %v1389
      %v1638 = vsel %vm711, %v1196, %v1391
      %v1639 = vsel %vm711, %v1197, %v1393
      %v1640 = vsel %vm711, %v1199, %v1395
      %v1641 = vsel %vm711, %v1200, %v1397
      %v1642 = vsel %vm711, %v1202, %v1399
      %v1643 = vsel %vm711, %v1203, %v1401
      %v1644 = vsel %vm711, %v1205, %v1403
      %v1645 = vsel %vm711, %v1206, %v1405
      %v1646 = vsel %vm744, %v1614, %v1519
      %v1647 = vsel %vm744, %v1615, %v1521
      %v1648 = vsel %vm744, %v1616, %v1523
      %v1649 = vsel %vm744, %v1617, %v1525
      %v1650 = vsel %vm744, %v1618, %v1527
      %v1651 = vsel %vm744, %v1619, %v1529
      %v1652 = vsel %vm744, %v1620, %v1531
      %v1653 = vsel %vm744, %v1621, %v1533
      %v1654 = vsel %vm744, %v1622, %v1535
      %v1655 = vsel %vm744, %v1623, %v1537
      %v1656 = vsel %vm744, %v1624, %v1539
      %v1657 = vsel %vm744, %v1625, %v1541
      %v1658 = vsel %vm744, %v1626, %v1543
      %v1659 = vsel %vm744, %v1627, %v1545
      %v1660 = vsel %vm744, %v1628, %v1547
      %v1661 = vsel %vm744, %v1629, %v1549
      %v1662 = vsel %vm744, %v1630, %v1551
      %v1663 = vsel %vm744, %v1631, %v1553
      %v1664 = vsel %vm744, %v1632, %v1555
      %v1665 = vsel %vm744, %v1633, %v1557
      %v1666 = vsel %vm744, %v1634, %v1559
      %v1667 = vsel %vm744, %v1635, %v1561
      %v1668 = vsel %vm744, %v1636, %v1563
      %v1669 = vsel %vm744, %v1637, %v1565
      %v1670 = vsel %vm744, %v1638, %v1567
      %v1671 = vsel %vm744, %v1639, %v1569
      %v1672 = vsel %vm744, %v1640, %v1571
      %v1673 = vsel %vm744, %v1641, %v1573
      %v1674 = vsel %vm744, %v1642, %v1575
      %v1675 = vsel %vm744, %v1643, %v1577
      %v1676 = vsel %vm744, %v1644, %v1579
      %v1677 = vsel %vm744, %v1645, %v1581
      %1710 = vrot.lane.b32.xlu0 %v1646, 36
      %v1711 = vpop.permute.xlu0 %1710
      %1712 = vrot.lane.b32.xlu0 %v1647, 36
      %v1713 = vpop.permute.xlu0 %1712
      %1714 = vrot.lane.b32.xlu0 %v1648, 36
      %v1715 = vpop.permute.xlu0 %1714
      %1716 = vrot.lane.b32.xlu0 %v1649, 36
      %v1717 = vpop.permute.xlu0 %1716
      %1718 = vrot.lane.b32.xlu0 %v1650, 36
      %v1719 = vpop.permute.xlu0 %1718
      %1720 = vrot.lane.b32.xlu0 %v1651, 36
      %v1721 = vpop.permute.xlu0 %1720
      %1722 = vrot.lane.b32.xlu0 %v1652, 36
      %v1723 = vpop.permute.xlu0 %1722
      %1724 = vrot.lane.b32.xlu0 %v1653, 36
      %v1725 = vpop.permute.xlu0 %1724
      %1726 = vrot.lane.b32.xlu0 %v1654, 36
      %v1727 = vpop.permute.xlu0 %1726
      %1728 = vrot.lane.b32.xlu0 %v1655, 36
      %v1729 = vpop.permute.xlu0 %1728
      %1730 = vrot.lane.b32.xlu0 %v1656, 36
      %v1731 = vpop.permute.xlu0 %1730
      %1732 = vrot.lane.b32.xlu0 %v1657, 36
      %v1733 = vpop.permute.xlu0 %1732
      %1734 = vrot.lane.b32.xlu0 %v1658, 36
      %v1735 = vpop.permute.xlu0 %1734
      %1736 = vrot.lane.b32.xlu0 %v1659, 36
      %v1737 = vpop.permute.xlu0 %1736
      %1738 = vrot.lane.b32.xlu0 %v1660, 36
      %v1739 = vpop.permute.xlu0 %1738
      %1740 = vrot.lane.b32.xlu0 %v1661, 36
      %v1741 = vpop.permute.xlu0 %1740
      %1742 = vrot.lane.b32.xlu0 %v1662, 36
      %v1743 = vpop.permute.xlu0 %1742
      %1744 = vrot.lane.b32.xlu0 %v1663, 36
      %v1745 = vpop.permute.xlu0 %1744
      %1746 = vrot.lane.b32.xlu0 %v1664, 36
      %v1747 = vpop.permute.xlu0 %1746
      %1748 = vrot.lane.b32.xlu0 %v1665, 36
      %v1749 = vpop.permute.xlu0 %1748
      %1750 = vrot.lane.b32.xlu0 %v1666, 36
      %v1751 = vpop.permute.xlu0 %1750
      %1752 = vrot.lane.b32.xlu0 %v1667, 36
      %v1753 = vpop.permute.xlu0 %1752
      %1754 = vrot.lane.b32.xlu0 %v1668, 36
      %v1755 = vpop.permute.xlu0 %1754
      %1756 = vrot.lane.b32.xlu0 %v1669, 36
      %v1757 = vpop.permute.xlu0 %1756
      %1758 = vrot.lane.b32.xlu0 %v1670, 36
      %v1759 = vpop.permute.xlu0 %1758
      %1760 = vrot.lane.b32.xlu0 %v1671, 36
      %v1761 = vpop.permute.xlu0 %1760
      %1762 = vrot.lane.b32.xlu0 %v1672, 36
      %v1763 = vpop.permute.xlu0 %1762
      %1764 = vrot.lane.b32.xlu0 %v1673, 36
      %v1765 = vpop.permute.xlu0 %1764
      %1766 = vrot.lane.b32.xlu0 %v1674, 36
      %v1767 = vpop.permute.xlu0 %1766
      %1768 = vrot.lane.b32.xlu0 %v1675, 36
      %v1769 = vpop.permute.xlu0 %1768
      %1770 = vrot.lane.b32.xlu0 %v1676, 36
      %v1771 = vpop.permute.xlu0 %1770
      %1772 = vrot.lane.b32.xlu0 %v1677, 36
      %v1773 = vpop.permute.xlu0 %1772
      %vm1806 = vcmask 392480
      %1807 = vst.msk [vmem:[#allocation2] sm:$0xff] %vm1806, %v1711
      %1808 = vst.msk [vmem:[#allocation2 + $0x8] sm:$0xff] %vm1806, %v1713
      %1809 = vst.msk [vmem:[#allocation2 + $0x10] sm:$0xff] %vm1806, %v1715
      %1810 = vst.msk [vmem:[#allocation2 + $0x18] sm:$0xff] %vm1806, %v1717
      %1811 = vst.msk [vmem:[#allocation2 + $0x20] sm:$0xff] %vm1806, %v1719
      %1812 = vst.msk [vmem:[#allocation2 + $0x28] sm:$0xff] %vm1806, %v1721
      %1813 = vst.msk [vmem:[#allocation2 + $0x30] sm:$0xff] %vm1806, %v1723
      %1814 = vst.msk [vmem:[#allocation2 + $0x38] sm:$0xff] %vm1806, %v1725
      %1815 = vst.msk [vmem:[#allocation2 + $0x40] sm:$0xff] %vm1806, %v1727
      %1816 = vst.msk [vmem:[#allocation2 + $0x48] sm:$0xff] %vm1806, %v1729
      %1817 = vst.msk [vmem:[#allocation2 + $0x50] sm:$0xff] %vm1806, %v1731
      %1818 = vst.msk [vmem:[#allocation2 + $0x58] sm:$0xff] %vm1806, %v1733
      %1819 = vst.msk [vmem:[#allocation2 + $0x60] sm:$0xff] %vm1806, %v1735
      %1820 = vst.msk [vmem:[#allocation2 + $0x68] sm:$0xff] %vm1806, %v1737
      %1821 = vst.msk [vmem:[#allocation2 + $0x70] sm:$0xff] %vm1806, %v1739
      %1822 = vst.msk [vmem:[#allocation2 + $0x78] sm:$0xff] %vm1806, %v1741
      %1823 = vst.msk [vmem:[#allocation2 + $0x80] sm:$0xff] %vm1806, %v1743
      %1824 = vst.msk [vmem:[#allocation2 + $0x88] sm:$0xff] %vm1806, %v1745
      %1825 = vst.msk [vmem:[#allocation2 + $0x90] sm:$0xff] %vm1806, %v1747
      %1826 = vst.msk [vmem:[#allocation2 + $0x98] sm:$0xff] %vm1806, %v1749
      %1827 = vst.msk [vmem:[#allocation2 + $0xa0] sm:$0xff] %vm1806, %v1751
      %1828 = vst.msk [vmem:[#allocation2 + $0xa8] sm:$0xff] %vm1806, %v1753
      %1829 = vst.msk [vmem:[#allocation2 + $0xb0] sm:$0xff] %vm1806, %v1755
      %1830 = vst.msk [vmem:[#allocation2 + $0xb8] sm:$0xff] %vm1806, %v1757
      %1831 = vst.msk [vmem:[#allocation2 + $0xc0] sm:$0xff] %vm1806, %v1759
      %1832 = vst.msk [vmem:[#allocation2 + $0xc8] sm:$0xff] %vm1806, %v1761
      %1833 = vst.msk [vmem:[#allocation2 + $0xd0] sm:$0xff] %vm1806, %v1763
      %1834 = vst.msk [vmem:[#allocation2 + $0xd8] sm:$0xff] %vm1806, %v1765
      %1835 = vst.msk [vmem:[#allocation2 + $0xe0] sm:$0xff] %vm1806, %v1767
      %1836 = vst.msk [vmem:[#allocation2 + $0xe8] sm:$0xff] %vm1806, %v1769
      %1837 = vst.msk [vmem:[#allocation2 + $0xf0] sm:$0xff] %vm1806, %v1771
      %1838 = vst.msk [vmem:[#allocation2 + $0xf8] sm:$0xff] %vm1806, %v1773
      %v1842 = vrot.slane %v1208, 1
      %v1843 = vrot.slane %v1209, 1
      %v1844 = vsel %vm357, %v1842, %v1843
      %v1845 = vrot.slane %v1210, 1
      %v1846 = vsel %vm357, %v1843, %v1845
      %1847 = vrot.lane.b32.xlu0 %v1844, 4
      %v1848 = vpop.permute.xlu0 %1847
      %1849 = vrot.lane.b32.xlu0 %v1846, 4
      %v1850 = vpop.permute.xlu0 %1849
      %v1853 = vrot.slane %v1208, 2
      %v1854 = vrot.slane %v1209, 2
      %v1855 = vsel %vm534, %v1853, %v1854
      %v1856 = vrot.slane %v1210, 2
      %v1857 = vsel %vm534, %v1854, %v1856
      %1858 = vrot.lane.b32.xlu0 %v1855, 8
      %v1859 = vpop.permute.xlu0 %1858
      %1860 = vrot.lane.b32.xlu0 %v1857, 8
      %v1861 = vpop.permute.xlu0 %1860
      %v1864 = vsel %vm711, %v1208, %v1848
      %v1865 = vsel %vm711, %v1209, %v1850
      %v1866 = vsel %vm744, %v1864, %v1859
      %v1867 = vsel %vm744, %v1865, %v1861
      %1870 = vrot.lane.b32.xlu0 %v1648, 48
      %v1871 = vpop.permute.xlu0 %1870
      %1872 = vrot.lane.b32.xlu0 %v1649, 48
      %v1873 = vpop.permute.xlu0 %1872
      %1874 = vrot.lane.b32.xlu0 %v1650, 48
      %v1875 = vpop.permute.xlu0 %1874
      %1876 = vrot.lane.b32.xlu0 %v1651, 48
      %v1877 = vpop.permute.xlu0 %1876
      %1878 = vrot.lane.b32.xlu0 %v1652, 48
      %v1879 = vpop.permute.xlu0 %1878
      %1880 = vrot.lane.b32.xlu0 %v1653, 48
      %v1881 = vpop.permute.xlu0 %1880
      %1882 = vrot.lane.b32.xlu0 %v1654, 48
      %v1883 = vpop.permute.xlu0 %1882
      %1884 = vrot.lane.b32.xlu0 %v1655, 48
      %v1885 = vpop.permute.xlu0 %1884
      %1886 = vrot.lane.b32.xlu0 %v1656, 48
      %v1887 = vpop.permute.xlu0 %1886
      %1888 = vrot.lane.b32.xlu0 %v1657, 48
      %v1889 = vpop.permute.xlu0 %1888
      %1890 = vrot.lane.b32.xlu0 %v1658, 48
      %v1891 = vpop.permute.xlu0 %1890
      %1892 = vrot.lane.b32.xlu0 %v1659, 48
      %v1893 = vpop.permute.xlu0 %1892
      %1894 = vrot.lane.b32.xlu0 %v1660, 48
      %v1895 = vpop.permute.xlu0 %1894
      %1896 = vrot.lane.b32.xlu0 %v1661, 48
      %v1897 = vpop.permute.xlu0 %1896
      %1898 = vrot.lane.b32.xlu0 %v1662, 48
      %v1899 = vpop.permute.xlu0 %1898
      %1900 = vrot.lane.b32.xlu0 %v1663, 48
      %v1901 = vpop.permute.xlu0 %1900
      %1902 = vrot.lane.b32.xlu0 %v1664, 48
      %v1903 = vpop.permute.xlu0 %1902
      %1904 = vrot.lane.b32.xlu0 %v1665, 48
      %v1905 = vpop.permute.xlu0 %1904
      %1906 = vrot.lane.b32.xlu0 %v1666, 48
      %v1907 = vpop.permute.xlu0 %1906
      %1908 = vrot.lane.b32.xlu0 %v1667, 48
      %v1909 = vpop.permute.xlu0 %1908
      %1910 = vrot.lane.b32.xlu0 %v1668, 48
      %v1911 = vpop.permute.xlu0 %1910
      %1912 = vrot.lane.b32.xlu0 %v1669, 48
      %v1913 = vpop.permute.xlu0 %1912
      %1914 = vrot.lane.b32.xlu0 %v1670, 48
      %v1915 = vpop.permute.xlu0 %1914
      %1916 = vrot.lane.b32.xlu0 %v1671, 48
      %v1917 = vpop.permute.xlu0 %1916
      %1918 = vrot.lane.b32.xlu0 %v1672, 48
      %v1919 = vpop.permute.xlu0 %1918
      %1920 = vrot.lane.b32.xlu0 %v1673, 48
      %v1921 = vpop.permute.xlu0 %1920
      %1922 = vrot.lane.b32.xlu0 %v1674, 48
      %v1923 = vpop.permute.xlu0 %1922
      %1924 = vrot.lane.b32.xlu0 %v1675, 48
      %v1925 = vpop.permute.xlu0 %1924
      %1926 = vrot.lane.b32.xlu0 %v1676, 48
      %v1927 = vpop.permute.xlu0 %1926
      %1928 = vrot.lane.b32.xlu0 %v1677, 48
      %v1929 = vpop.permute.xlu0 %1928
      %1930 = vrot.lane.b32.xlu0 %v1866, 48
      %v1931 = vpop.permute.xlu0 %1930
      %1932 = vrot.lane.b32.xlu0 %v1867, 48
      %v1933 = vpop.permute.xlu0 %1932
      %vm1966 = vcmask 490880
      %1967 = vst.msk [vmem:[#allocation2] sm:$0xff] %vm1966, %v1871
      %1968 = vst.msk [vmem:[#allocation2 + $0x8] sm:$0xff] %vm1966, %v1873
      %1969 = vst.msk [vmem:[#allocation2 + $0x10] sm:$0xff] %vm1966, %v1875
      %1970 = vst.msk [vmem:[#allocation2 + $0x18] sm:$0xff] %vm1966, %v1877
      %1971 = vst.msk [vmem:[#allocation2 + $0x20] sm:$0xff] %vm1966, %v1879
      %1972 = vst.msk [vmem:[#allocation2 + $0x28] sm:$0xff] %vm1966, %v1881
      %1973 = vst.msk [vmem:[#allocation2 + $0x30] sm:$0xff] %vm1966, %v1883
      %1974 = vst.msk [vmem:[#allocation2 + $0x38] sm:$0xff] %vm1966, %v1885
      %1975 = vst.msk [vmem:[#allocation2 + $0x40] sm:$0xff] %vm1966, %v1887
      %1976 = vst.msk [vmem:[#allocation2 + $0x48] sm:$0xff] %vm1966, %v1889
      %1977 = vst.msk [vmem:[#allocation2 + $0x50] sm:$0xff] %vm1966, %v1891
      %1978 = vst.msk [vmem:[#allocation2 + $0x58] sm:$0xff] %vm1966, %v1893
      %1979 = vst.msk [vmem:[#allocation2 + $0x60] sm:$0xff] %vm1966, %v1895
      %1980 = vst.msk [vmem:[#allocation2 + $0x68] sm:$0xff] %vm1966, %v1897
      %1981 = vst.msk [vmem:[#allocation2 + $0x70] sm:$0xff] %vm1966, %v1899
      %1982 = vst.msk [vmem:[#allocation2 + $0x78] sm:$0xff] %vm1966, %v1901
      %1983 = vst.msk [vmem:[#allocation2 + $0x80] sm:$0xff] %vm1966, %v1903
      %1984 = vst.msk [vmem:[#allocation2 + $0x88] sm:$0xff] %vm1966, %v1905
      %1985 = vst.msk [vmem:[#allocation2 + $0x90] sm:$0xff] %vm1966, %v1907
      %1986 = vst.msk [vmem:[#allocation2 + $0x98] sm:$0xff] %vm1966, %v1909
      %1987 = vst.msk [vmem:[#allocation2 + $0xa0] sm:$0xff] %vm1966, %v1911
      %1988 = vst.msk [vmem:[#allocation2 + $0xa8] sm:$0xff] %vm1966, %v1913
      %1989 = vst.msk [vmem:[#allocation2 + $0xb0] sm:$0xff] %vm1966, %v1915
      %1990 = vst.msk [vmem:[#allocation2 + $0xb8] sm:$0xff] %vm1966, %v1917
      %1991 = vst.msk [vmem:[#allocation2 + $0xc0] sm:$0xff] %vm1966, %v1919
      %1992 = vst.msk [vmem:[#allocation2 + $0xc8] sm:$0xff] %vm1966, %v1921
      %1993 = vst.msk [vmem:[#allocation2 + $0xd0] sm:$0xff] %vm1966, %v1923
      %1994 = vst.msk [vmem:[#allocation2 + $0xd8] sm:$0xff] %vm1966, %v1925
      %1995 = vst.msk [vmem:[#allocation2 + $0xe0] sm:$0xff] %vm1966, %v1927
      %1996 = vst.msk [vmem:[#allocation2 + $0xe8] sm:$0xff] %vm1966, %v1929
      %1997 = vst.msk [vmem:[#allocation2 + $0xf0] sm:$0xff] %vm1966, %v1931
      %1998 = vst.msk [vmem:[#allocation2 + $0xf8] sm:$0xff] %vm1966, %v1933
      %v2002 = vrot.slane %v1211, 1
      %v2003 = vrot.slane %v1212, 1
      %v2004 = vsel %vm357, %v2002, %v2003
      %v2005 = vrot.slane %v1213, 1
      %v2006 = vsel %vm357, %v2003, %v2005
      %2007 = vrot.lane.b32.xlu0 %v2004, 4
      %v2008 = vpop.permute.xlu0 %2007
      %2009 = vrot.lane.b32.xlu0 %v2006, 4
      %v2010 = vpop.permute.xlu0 %2009
      %v2013 = vrot.slane %v1211, 2
      %v2014 = vrot.slane %v1212, 2
      %v2015 = vsel %vm534, %v2013, %v2014
      %v2016 = vrot.slane %v1213, 2
      %v2017 = vsel %vm534, %v2014, %v2016
      %2018 = vrot.lane.b32.xlu0 %v2015, 8
      %v2019 = vpop.permute.xlu0 %2018
      %2020 = vrot.lane.b32.xlu0 %v2017, 8
      %v2021 = vpop.permute.xlu0 %2020
      %v2024 = vsel %vm711, %v1211, %v2008
      %v2025 = vsel %vm711, %v1212, %v2010
      %v2026 = vsel %vm744, %v2024, %v2019
      %v2027 = vsel %vm744, %v2025, %v2021
      %2030 = vrot.lane.b32.xlu0 %v1650, 60
      %v2031 = vpop.permute.xlu0 %2030
      %2032 = vrot.lane.b32.xlu0 %v1651, 60
      %v2033 = vpop.permute.xlu0 %2032
      %2034 = vrot.lane.b32.xlu0 %v1652, 60
      %v2035 = vpop.permute.xlu0 %2034
      %2036 = vrot.lane.b32.xlu0 %v1653, 60
      %v2037 = vpop.permute.xlu0 %2036
      %2038 = vrot.lane.b32.xlu0 %v1654, 60
      %v2039 = vpop.permute.xlu0 %2038
      %2040 = vrot.lane.b32.xlu0 %v1655, 60
      %v2041 = vpop.permute.xlu0 %2040
      %2042 = vrot.lane.b32.xlu0 %v1656, 60
      %v2043 = vpop.permute.xlu0 %2042
      %2044 = vrot.lane.b32.xlu0 %v1657, 60
      %v2045 = vpop.permute.xlu0 %2044
      %2046 = vrot.lane.b32.xlu0 %v1658, 60
      %v2047 = vpop.permute.xlu0 %2046
      %2048 = vrot.lane.b32.xlu0 %v1659, 60
      %v2049 = vpop.permute.xlu0 %2048
      %2050 = vrot.lane.b32.xlu0 %v1660, 60
      %v2051 = vpop.permute.xlu0 %2050
      %2052 = vrot.lane.b32.xlu0 %v1661, 60
      %v2053 = vpop.permute.xlu0 %2052
      %2054 = vrot.lane.b32.xlu0 %v1662, 60
      %v2055 = vpop.permute.xlu0 %2054
      %2056 = vrot.lane.b32.xlu0 %v1663, 60
      %v2057 = vpop.permute.xlu0 %2056
      %2058 = vrot.lane.b32.xlu0 %v1664, 60
      %v2059 = vpop.permute.xlu0 %2058
      %2060 = vrot.lane.b32.xlu0 %v1665, 60
      %v2061 = vpop.permute.xlu0 %2060
      %2062 = vrot.lane.b32.xlu0 %v1666, 60
      %v2063 = vpop.permute.xlu0 %2062
      %2064 = vrot.lane.b32.xlu0 %v1667, 60
      %v2065 = vpop.permute.xlu0 %2064
      %2066 = vrot.lane.b32.xlu0 %v1668, 60
      %v2067 = vpop.permute.xlu0 %2066
      %2068 = vrot.lane.b32.xlu0 %v1669, 60
      %v2069 = vpop.permute.xlu0 %2068
      %2070 = vrot.lane.b32.xlu0 %v1670, 60
      %v2071 = vpop.permute.xlu0 %2070
      %2072 = vrot.lane.b32.xlu0 %v1671, 60
      %v2073 = vpop.permute.xlu0 %2072
      %2074 = vrot.lane.b32.xlu0 %v1672, 60
      %v2075 = vpop.permute.xlu0 %2074
      %2076 = vrot.lane.b32.xlu0 %v1673, 60
      %v2077 = vpop.permute.xlu0 %2076
      %2078 = vrot.lane.b32.xlu0 %v1674, 60
      %v2079 = vpop.permute.xlu0 %2078
      %2080 = vrot.lane.b32.xlu0 %v1675, 60
      %v2081 = vpop.permute.xlu0 %2080
      %2082 = vrot.lane.b32.xlu0 %v1676, 60
      %v2083 = vpop.permute.xlu0 %2082
      %2084 = vrot.lane.b32.xlu0 %v1677, 60
      %v2085 = vpop.permute.xlu0 %2084
      %2086 = vrot.lane.b32.xlu0 %v1866, 60
      %v2087 = vpop.permute.xlu0 %2086
      %2088 = vrot.lane.b32.xlu0 %v1867, 60
      %v2089 = vpop.permute.xlu0 %2088
      %2090 = vrot.lane.b32.xlu0 %v2026, 60
      %v2091 = vpop.permute.xlu0 %2090
      %2092 = vrot.lane.b32.xlu0 %v2027, 60
      %v2093 = vpop.permute.xlu0 %2092
      %vm2126 = vcmask 589280
      %2127 = vst.msk [vmem:[#allocation2] sm:$0xff] %vm2126, %v2031
      %2128 = vst.msk [vmem:[#allocation2 + $0x8] sm:$0xff] %vm2126, %v2033
      %2129 = vst.msk [vmem:[#allocation2 + $0x10] sm:$0xff] %vm2126, %v2035
      %2130 = vst.msk [vmem:[#allocation2 + $0x18] sm:$0xff] %vm2126, %v2037
      %2131 = vst.msk [vmem:[#allocation2 + $0x20] sm:$0xff] %vm2126, %v2039
      %2132 = vst.msk [vmem:[#allocation2 + $0x28] sm:$0xff] %vm2126, %v2041
      %2133 = vst.msk [vmem:[#allocation2 + $0x30] sm:$0xff] %vm2126, %v2043
      %2134 = vst.msk [vmem:[#allocation2 + $0x38] sm:$0xff] %vm2126, %v2045
      %2135 = vst.msk [vmem:[#allocation2 + $0x40] sm:$0xff] %vm2126, %v2047
      %2136 = vst.msk [vmem:[#allocation2 + $0x48] sm:$0xff] %vm2126, %v2049
      %2137 = vst.msk [vmem:[#allocation2 + $0x50] sm:$0xff] %vm2126, %v2051
      %2138 = vst.msk [vmem:[#allocation2 + $0x58] sm:$0xff] %vm2126, %v2053
      %2139 = vst.msk [vmem:[#allocation2 + $0x60] sm:$0xff] %vm2126, %v2055
      %2140 = vst.msk [vmem:[#allocation2 + $0x68] sm:$0xff] %vm2126, %v2057
      %2141 = vst.msk [vmem:[#allocation2 + $0x70] sm:$0xff] %vm2126, %v2059
      %2142 = vst.msk [vmem:[#allocation2 + $0x78] sm:$0xff] %vm2126, %v2061
      %2143 = vst.msk [vmem:[#allocation2 + $0x80] sm:$0xff] %vm2126, %v2063
      %2144 = vst.msk [vmem:[#allocation2 + $0x88] sm:$0xff] %vm2126, %v2065
      %2145 = vst.msk [vmem:[#allocation2 + $0x90] sm:$0xff] %vm2126, %v2067
      %2146 = vst.msk [vmem:[#allocation2 + $0x98] sm:$0xff] %vm2126, %v2069
      %2147 = vst.msk [vmem:[#allocation2 + $0xa0] sm:$0xff] %vm2126, %v2071
      %2148 = vst.msk [vmem:[#allocation2 + $0xa8] sm:$0xff] %vm2126, %v2073
      %2149 = vst.msk [vmem:[#allocation2 + $0xb0] sm:$0xff] %vm2126, %v2075
      %2150 = vst.msk [vmem:[#allocation2 + $0xb8] sm:$0xff] %vm2126, %v2077
      %2151 = vst.msk [vmem:[#allocation2 + $0xc0] sm:$0xff] %vm2126, %v2079
      %2152 = vst.msk [vmem:[#allocation2 + $0xc8] sm:$0xff] %vm2126, %v2081
      %2153 = vst.msk [vmem:[#allocation2 + $0xd0] sm:$0xff] %vm2126, %v2083
      %2154 = vst.msk [vmem:[#allocation2 + $0xd8] sm:$0xff] %vm2126, %v2085
      %2155 = vst.msk [vmem:[#allocation2 + $0xe0] sm:$0xff] %vm2126, %v2087
      %2156 = vst.msk [vmem:[#allocation2 + $0xe8] sm:$0xff] %vm2126, %v2089
      %2157 = vst.msk [vmem:[#allocation2 + $0xf0] sm:$0xff] %vm2126, %v2091
      %2158 = vst.msk [vmem:[#allocation2 + $0xf8] sm:$0xff] %vm2126, %v2093
      %v2159 = vld [vmem:[%s2] sm:$0xff]
      %v2160 = vld [vmem:[#allocation2] sm:$0xff]
      %v2161 = vld [vmem:[#allocation2 + $0x8] sm:$0xff]
      %v2162 = vld [vmem:[#allocation2 + $0x10] sm:$0xff]
      %v2163 = vld [vmem:[#allocation2 + $0x18] sm:$0xff]
      %v2164 = vld [vmem:[#allocation2 + $0x20] sm:$0xff]
      %v2165 = vld [vmem:[#allocation2 + $0x28] sm:$0xff]
      %v2166 = vld [vmem:[#allocation2 + $0x30] sm:$0xff]
      %v2167 = vld [vmem:[#allocation2 + $0x38] sm:$0xff]
      %v2168 = vld [vmem:[#allocation2 + $0x40] sm:$0xff]
      %v2169 = vld [vmem:[#allocation2 + $0x48] sm:$0xff]
      %v2170 = vld [vmem:[#allocation2 + $0x50] sm:$0xff]
      %v2171 = vld [vmem:[#allocation2 + $0x58] sm:$0xff]
      %v2172 = vld [vmem:[#allocation2 + $0x60] sm:$0xff]
      %v2173 = vld [vmem:[#allocation2 + $0x68] sm:$0xff]
      %v2174 = vld [vmem:[#allocation2 + $0x70] sm:$0xff]
      %v2175 = vld [vmem:[#allocation2 + $0x78] sm:$0xff]
      %v2176 = vld [vmem:[#allocation2 + $0x80] sm:$0xff]
      %v2177 = vld [vmem:[#allocation2 + $0x88] sm:$0xff]
      %v2178 = vld [vmem:[#allocation2 + $0x90] sm:$0xff]
      %v2179 = vld [vmem:[#allocation2 + $0x98] sm:$0xff]
      %v2180 = vld [vmem:[#allocation2 + $0xa0] sm:$0xff]
      %v2181 = vld [vmem:[#allocation2 + $0xa8] sm:$0xff]
      %v2182 = vld [vmem:[#allocation2 + $0xb0] sm:$0xff]
      %v2183 = vld [vmem:[#allocation2 + $0xb8] sm:$0xff]
      %v2184 = vld [vmem:[#allocation2 + $0xc0] sm:$0xff]
      %v2185 = vld [vmem:[#allocation2 + $0xc8] sm:$0xff]
      %v2186 = vld [vmem:[#allocation2 + $0xd0] sm:$0xff]
      %v2187 = vld [vmem:[#allocation2 + $0xd8] sm:$0xff]
      %v2188 = vld [vmem:[#allocation2 + $0xe0] sm:$0xff]
      %v2189 = vld [vmem:[#allocation2 + $0xe8] sm:$0xff]
      %v2190 = vld [vmem:[#allocation2 + $0xf0] sm:$0xff]
      %v2191 = vld [vmem:[#allocation2 + $0xf8] sm:$0xff]
      %v2192 = vld [vmem:[%s3] sm:$0xff]
      %2194 = vset.pattern.permute.xlu0 0
      %2195 = vperm.xlu0 %2194, %v2192
      %v2196 = vpop.permute.xlu0 %2195
      %vm2198 = vcmask 588800
      %v2200 = vsel %vm2198, %v2159, 0
      %v2203 = vsel %vm2198, %v2160, 0
      %v2206 = vsel %vm2198, %v2161, 0
      %v2209 = vsel %vm2198, %v2162, 0
      %v2212 = vsel %vm2198, %v2163, 0
      %v2215 = vsel %vm2198, %v2164, 0
      %v2218 = vsel %vm2198, %v2165, 0
      %v2221 = vsel %vm2198, %v2166, 0
      %v2224 = vsel %vm2198, %v2167, 0
      %v2227 = vsel %vm2198, %v2168, 0
      %v2230 = vsel %vm2198, %v2169, 0
      %v2233 = vsel %vm2198, %v2170, 0
      %v2236 = vsel %vm2198, %v2171, 0
      %v2239 = vsel %vm2198, %v2172, 0
      %v2242 = vsel %vm2198, %v2173, 0
      %v2245 = vsel %vm2198, %v2174, 0
      %v2248 = vsel %vm2198, %v2175, 0
      %v2251 = vsel %vm2198, %v2176, 0
      %v2254 = vsel %vm2198, %v2177, 0
      %v2257 = vsel %vm2198, %v2178, 0
      %v2260 = vsel %vm2198, %v2179, 0
      %v2263 = vsel %vm2198, %v2180, 0
      %v2266 = vsel %vm2198, %v2181, 0
      %v2269 = vsel %vm2198, %v2182, 0
      %v2272 = vsel %vm2198, %v2183, 0
      %v2275 = vsel %vm2198, %v2184, 0
      %v2278 = vsel %vm2198, %v2185, 0
      %v2281 = vsel %vm2198, %v2186, 0
      %v2284 = vsel %vm2198, %v2187, 0
      %v2287 = vsel %vm2198, %v2188, 0
      %v2290 = vsel %vm2198, %v2189, 0
      %v2293 = vsel %vm2198, %v2190, 0
      %v2296 = vsel %vm2198, %v2191, 0
      %2298 = vmatprep.subr.mxu0 0.0
      %2299 = vmatpush1.xpose.msra.mxu0 %v2203
      %2300 = vmatprep.subr.mxu0 0.0
      %2301 = vmatpush1.xpose.msra.mxu0 %v2206
      %2302 = vmatprep.subr.mxu0 0.0
      %2303 = vmatpush1.xpose.msra.mxu0 %v2209
      %2304 = vmatprep.subr.mxu0 0.0
      %2305 = vmatpush1.xpose.msra.mxu0 %v2212
      %2306 = vmatprep.subr.mxu0 0.0
      %2307 = vmatpush1.xpose.msra.mxu0 %v2215
      %2308 = vmatprep.subr.mxu0 0.0
      %2309 = vmatpush1.xpose.msra.mxu0 %v2218
      %2310 = vmatprep.subr.mxu0 0.0
      %2311 = vmatpush1.xpose.msra.mxu0 %v2221
      %2312 = vmatprep.subr.mxu0 0.0
      %2313 = vmatpush1.xpose.msra.mxu0 %v2224
      %2314 = vmatprep.subr.mxu0 0.0
      %2315 = vmatpush1.xpose.msra.mxu0 %v2227
      %2316 = vmatprep.subr.mxu0 0.0
      %2317 = vmatpush1.xpose.msra.mxu0 %v2230
      %2318 = vmatprep.subr.mxu0 0.0
      %2319 = vmatpush1.xpose.msra.mxu0 %v2233
      %2320 = vmatprep.subr.mxu0 0.0
      %2321 = vmatpush1.xpose.msra.mxu0 %v2236
      %2322 = vmatprep.subr.mxu0 0.0
      %2323 = vmatpush1.xpose.msra.mxu0 %v2239
      %2324 = vmatprep.subr.mxu0 0.0
      %2325 = vmatpush1.xpose.msra.mxu0 %v2242
      %2326 = vmatprep.subr.mxu0 0.0
      %2327 = vmatpush1.xpose.msra.mxu0 %v2245
      %2328 = vmatprep.subr.mxu0 0.0
      %2329 = vmatpush1.xpose.msra.mxu0 %v2248
      %2330 = vmatprep.subr.mxu0 0.0
      %2331 = vmatpush1.xpose.msra.mxu0 %v2251
      %2332 = vmatprep.subr.mxu0 0.0
      %2333 = vmatpush1.xpose.msra.mxu0 %v2254
      %2334 = vmatprep.subr.mxu0 0.0
      %2335 = vmatpush1.xpose.msra.mxu0 %v2257
      %2336 = vmatprep.subr.mxu0 0.0
      %2337 = vmatpush1.xpose.msra.mxu0 %v2260
      %2338 = vmatprep.subr.mxu0 0.0
      %2339 = vmatpush1.xpose.msra.mxu0 %v2263
      %2340 = vmatprep.subr.mxu0 0.0
      %2341 = vmatpush1.xpose.msra.mxu0 %v2266
      %2342 = vmatprep.subr.mxu0 0.0
      %2343 = vmatpush1.xpose.msra.mxu0 %v2269
      %2344 = vmatprep.subr.mxu0 0.0
      %2345 = vmatpush1.xpose.msra.mxu0 %v2272
      %2346 = vmatprep.subr.mxu0 0.0
      %2347 = vmatpush1.xpose.msra.mxu0 %v2275
      %2348 = vmatprep.subr.mxu0 0.0
      %2349 = vmatpush1.xpose.msra.mxu0 %v2278
      %2350 = vmatprep.subr.mxu0 0.0
      %2351 = vmatpush1.xpose.msra.mxu0 %v2281
      %2352 = vmatprep.subr.mxu0 0.0
      %2353 = vmatpush1.xpose.msra.mxu0 %v2284
      %2354 = vmatprep.subr.mxu0 0.0
      %2355 = vmatpush1.xpose.msra.mxu0 %v2287
      %2356 = vmatprep.subr.mxu0 0.0
      %2357 = vmatpush1.xpose.msra.mxu0 %v2290
      %2358 = vmatprep.subr.mxu0 0.0
      %2359 = vmatpush1.xpose.msra.mxu0 %v2293
      %2360 = vmatprep.subr.mxu0 0.0
      %2361 = vmatpush1.xpose.msra.mxu0 %v2296
      %2362 = vmatprep.mubr.f32.mxu0 0.0
      %2363 = vmatmul.mubr.f32.gmra.mrb[0].mxu0 %v2200
      %v2364 = vpop.f32.mrb[0].mxu0
      %v2365 = vadd.f32 %v2196, %v2364
      %v2366 = vpop.f32.mrb[0].mxu0
      %v2367 = vadd.f32 %v2196, %v2366
      %2368 = vdwg.mxu0
      %v2369 = vmin.f32 %v2365, 0.0
      %v2370 = vmin.f32 %v2367, 0.0
      %v2371 = vmul.f32 %v2369, 1.442695
      %v2372 = vpow.pop %v2371
      %v2373 = vmul.f32 %v2370, 1.442695
      %v2374 = vpow.pop %v2373
      %v2375 = vsub.f32 %v2372, 1.0
      %v2376 = vsub.f32 %v2374, 1.0
      %vm2377 = vcmp.gt.f32.partialorder %v2365, 0.0
      %vm2378 = vcmp.gt.f32.partialorder %v2367, 0.0
      %v2379 = vsel %vm2377, %v2365, %v2375
      %v2380 = vsel %vm2378, %v2367, %v2376
      %2381 = vst [vmem:[%s253] sm:$0xff] %v2379
      %2382 = vst [vmem:[%s253 + $0x8] sm:$0xff] %v2380
      %s2383 = smul.u32 2, %s20
      %p2384 = scmp.lt.s32.totalorder %s19, 1
      %s2385 = scalar_select %p2384, %s19, 1
      %p2386 = scmp.lt.s32.totalorder %s2383, 1
      %s2387 = scalar_select %p2386, %s2383, 1
      %s2388 = smul.addr %s2385, 2
      %s2389 = sadd.s32 %s2387, %s2388
      %s2390 = smul.addr %s2389, 8
      %s2391 = scalar_lea.vmem %s4, %s2390
      // Predicated region
      $region37: #{up_skip_block_forward.1} parent=35 // pred_check
        %p2392 = pneg %p145
      $region38: #{up_skip_block_forward.1} parent=35 // pred_check_branch
        %2394 = sbr.rel (%p2392) target = $region40
      $region39: #{up_skip_block_forward.1} parent=35 // pred_region
        %s2395 = smul.u32 2, %s20
      $region40: #{up_skip_block_forward.1} parent=35 // pred_fallthru
        _
    $region36: #{up_skip_block_forward.1} parent=5 // pred_fallthru
      _
    %p2396 = scmp.le.s32.totalorder 2, %s10
    // Predicated region
    $region41: #{up_skip_block_forward.1} parent=5 // pred_check
      %p2397 = pneg %p2396
    $region42: #{up_skip_block_forward.1} parent=5 // pred_check_branch
      %2399 = sbr.rel (%p2397) target = $region44
    $region43: #{up_skip_block_forward.1} parent=5 // pred_region
      %s2400 = ssub.s32 %s10, 2
      // Predicated region
      $region45: #{up_skip_block_forward.1} parent=43 // pred_check
        %p2401 = pneg %p151
      $region46: #{up_skip_block_forward.1} parent=43 // pred_check_branch
        %2403 = sbr.rel (%p2401) target = $region48
      $region47: #{up_skip_block_forward.1} parent=43 // pred_region
        %s2404 = smul.u32 2, %s22
        %p2405 = scmp.lt.s32.totalorder %s21, 1
        %s2406 = scalar_select %p2405, %s21, 1
        %p2407 = scmp.lt.s32.totalorder %s2404, 1
        %s2408 = scalar_select %p2407, %s2404, 1
        %s2409 = smul.addr %s2406, 2
        %s2410 = sadd.s32 %s2408, %s2409
        %s2411 = smul.addr %s2410, 8
        %s2412 = scalar_lea.vmem %s4, %s2411
      $region48: #{up_skip_block_forward.1} parent=43 // pred_fallthru
        _
    $region44: #{up_skip_block_forward.1} parent=5 // pred_fallthru
      _
  $region6: #{up_skip_block_forward.1} parent=0 // loop_footer
    %s14 = sadd.s32 1, %s10
  $region7: #{up_skip_block_forward.1} parent=0 // loop_footer_branch
    %9 = sbr.rel target = $region3
  $region8: #{up_skip_block_forward.1} parent=0 // loop_exit
    _

</llo_original>
